<compile_context>
chip_gen: v7x
topology: tpu7x:2x2x1
jax: 0.10.0
libtpu: 0.0.40
codegen_flags: <defaults>
</compile_context>

<pallas_src>
import functools

import jax
import jax.numpy as jnp
from jax import lax
from jax.experimental import pallas as pl
from jax.experimental.pallas import tpu as pltpu

TAG_PAD = 128  # lane-dense output width (pad tagset up to one full vreg lane extent)


def lstm_tagger_kernel(x_ref, wih_ref, whh_ref, b_ref, wtag_ref, btag_ref,
                       out_ref, xg_scr, h_scr, *, hidden_dim, batch, unroll):
    """Batched LSTM recurrence (serial part minimized) + hidden2tag + log_softmax."""
    H = hidden_dim
    B = batch
    TB = x_ref.shape[0]          # T * B rows, time-major
    T = TB // B

    # --- hoisted input projection, bias folded in: ONE MXU matmul + ONE broadcast add
    xg_scr[...] = (jnp.dot(x_ref[...], wih_ref[...],
                           preferred_element_type=jnp.float32)
                   + b_ref[...])                                       # (T*B, 4H)

    whh = whh_ref[...]           # (H, 4H), i/f/o columns pre-scaled by 0.5

    # Lane mask selecting the 'g' (cell-candidate) gate block; hoisted out of the loop.
    lane = lax.broadcasted_iota(jnp.int32, (1, 4 * H), 1)
    is_g = jnp.logical_and(lane >= 2 * H, lane < 3 * H)

    def step(t, carry):
        h_prev, c_prev = carry                                         # (B, H) vregs
        row = pl.multiple_of(t * B, B)                                 # sublane-aligned
        gates = xg_scr[pl.ds(row, B), :] + jnp.dot(
            h_prev, whh, preferred_element_type=jnp.float32)           # (B, 4H)
        # Single EUP pass: sigmoid(x) = 0.5*tanh(x/2)+0.5 with pre-scaled i/f/o cols.
        tg = jnp.tanh(gates)
        act = jnp.where(is_g, tg, 0.5 * tg + 0.5)
        i = act[:, 0 * H:1 * H]
        f = act[:, 1 * H:2 * H]
        g = act[:, 2 * H:3 * H]
        o = act[:, 3 * H:4 * H]
        c = f * c_prev + i * g
        h = o * jnp.tanh(c)
        h_scr[pl.ds(row, B), :] = h                                    # one store per step
        return (h, c)

    h0 = jnp.zeros((B, H), jnp.float32)   # model.init_hidden(): zero (h, c)
    c0 = jnp.zeros((B, H), jnp.float32)
    lax.fori_loop(0, T, step, (h0, c0), unroll=unroll)

    # --- batched hidden2tag + log_softmax over all T*B rows, lane-dense output ------
    logits = (jnp.dot(h_scr[...], wtag_ref[...],
                      preferred_element_type=jnp.float32)
              + btag_ref[...])                                         # (T*B, TAG_PAD)
    m = jnp.max(logits, axis=-1, keepdims=True)
    lse = m + jnp.log(jnp.sum(jnp.exp(logits - m), axis=-1, keepdims=True))
    out_ref[...] = logits - lse


def prepare_params(w_ih, w_hh, b_ih, b_hh, w_tag, b_tag):
    """One-time (model-load) weight prep: transpose, gate pre-scale, tag-lane pad."""
    four_h = w_ih.shape[0]
    H = four_h // 4
    tagset = w_tag.shape[0]
    assert tagset <= TAG_PAD

    # Scale i/f/o gate rows by 0.5 so one tanh in-kernel reproduces sigmoid exactly.
    gate_scale = jnp.concatenate([
        jnp.full((2 * H,), 0.5, jnp.float32),   # i, f
        jnp.ones((H,), jnp.float32),            # g
        jnp.full((H,), 0.5, jnp.float32),       # o
    ])
    wih_t = jnp.transpose(w_ih * gate_scale[:, None]).astype(jnp.float32)  # (E, 4H)
    whh_t = jnp.transpose(w_hh * gate_scale[:, None]).astype(jnp.float32)  # (H, 4H)
    b = ((b_ih + b_hh) * gate_scale).reshape(1, four_h).astype(jnp.float32)

    # Pad the tag (lane) dimension to 128: zero weight columns, -1e30 bias on pad lanes.
    wtag_t = jnp.transpose(w_tag).astype(jnp.float32)                      # (H, tagset)
    wtag_pad = jnp.zeros((H, TAG_PAD), jnp.float32).at[:, :tagset].set(wtag_t)
    btag_pad = jnp.full((1, TAG_PAD), -1e30, jnp.float32).at[0, :tagset].set(
        b_tag.astype(jnp.float32))

    return dict(wih_t=wih_t, whh_t=whh_t, b=b, wtag=wtag_pad, btag=btag_pad,
                hidden_dim=H, tagset=tagset)


def lstm_tagger_forward_batched(params, x):
    """x: (B, T, E) -- B independent sentences per kernel invocation.  Returns (B, T, tagset)."""
    H = params["hidden_dim"]
    tagset = params["tagset"]
    four_h = 4 * H
    B, T, E = x.shape

    # Time-major flatten so each step reads/writes one aligned (B, .) row block.
    x_flat = jnp.transpose(x.astype(jnp.float32), (1, 0, 2)).reshape(T * B, E)

    kernel = functools.partial(lstm_tagger_kernel, hidden_dim=H, batch=B,
                               unroll=min(T, 8))
    vmem = pl.BlockSpec(memory_space=pltpu.MemorySpace.VMEM)

    out_padded = pl.pallas_call(
        kernel,
        out_shape=jax.ShapeDtypeStruct((T * B, TAG_PAD), jnp.float32),
        in_specs=[vmem] * 6,
        out_specs=vmem,
        scratch_shapes=[
            pltpu.VMEM((T * B, four_h), jnp.float32),   # xg = x @ W_ih + b (all steps)
            pltpu.VMEM((T * B, H), jnp.float32),        # all hidden states h_t
        ],
    )(x_flat, params["wih_t"], params["whh_t"], params["b"],
      params["wtag"], params["btag"])

    out = out_padded.reshape(T, B, TAG_PAD)[:, :, :tagset]   # (T, B, tagset)
    return jnp.transpose(out, (1, 0, 2))                     # (B, T, tagset)


def lstm_tagger_forward(params, x):
    """Single sentence x: (T, E) -- the original module's forward.  Returns (T, tagset)."""
    return lstm_tagger_forward_batched(params, x[None])[0]


def reference_forward(x, w_ih, w_hh, b_ih, b_hh, w_tag, b_tag):
    """Pure-JAX reference mirroring nn.LSTM + nn.Linear + log_softmax (one sentence)."""
    H = w_hh.shape[1]

    def cell(carry, x_t):
        h, c = carry
        gates = x_t @ w_ih.T + b_ih + h @ w_hh.T + b_hh
        i = jax.nn.sigmoid(gates[0 * H:1 * H])
        f = jax.nn.sigmoid(gates[1 * H:2 * H])
        g = jnp.tanh(gates[2 * H:3 * H])
        o = jax.nn.sigmoid(gates[3 * H:4 * H])
        c = f * c + i * g
        h = o * jnp.tanh(c)
        return (h, c), h

    h0 = jnp.zeros((H,), jnp.float32)
    c0 = jnp.zeros((H,), jnp.float32)
    _, hs = lax.scan(cell, (h0, c0), x)                # (T, H)
    logits = hs @ w_tag.T + b_tag                      # (T, tagset)
    return jax.nn.log_softmax(logits, axis=-1)


if __name__ == "__main__":
    # Small shapes consistent with the module (EMBEDDING_DIM / HIDDEN_DIM scaled down).
    B, T, E, H, TAGSET = 8, 8, 32, 32, 8

    key = jax.random.PRNGKey(0)
    ks = jax.random.split(key, 7)
    scale = 1.0 / jnp.sqrt(H)

    x = jax.random.normal(ks[0], (B, T, E), dtype=jnp.float32)          # B "sentences"
    w_ih = jax.random.uniform(ks[1], (4 * H, E), jnp.float32, -scale, scale)
    w_hh = jax.random.uniform(ks[2], (4 * H, H), jnp.float32, -scale, scale)
    b_ih = jax.random.uniform(ks[3], (4 * H,), jnp.float32, -scale, scale)
    b_hh = jax.random.uniform(ks[4], (4 * H,), jnp.float32, -scale, scale)
    w_tag = jax.random.uniform(ks[5], (TAGSET, H), jnp.float32, -scale, scale)
    b_tag = jax.random.uniform(ks[6], (TAGSET,), jnp.float32, -scale, scale)

    # One-time weight prep (model-load time), reused across all forward calls.
    params = prepare_params(w_ih, w_hh, b_ih, b_hh, w_tag, b_tag)

    # --- single sentence (original module semantics) ---------------------------------
    out1 = lstm_tagger_forward(params, x[0])
    out1 = jax.block_until_ready(out1)
    ref1 = reference_forward(x[0], w_ih, w_hh, b_ih, b_hh, w_tag, b_tag)
    assert out1.shape == (T, TAGSET)
    assert jnp.allclose(out1, ref1, rtol=1e-3, atol=1e-3), "single-sentence mismatch"

    # --- batched: B=8 sentences per kernel invocation (perf review's biggest lever) --
    outB = lstm_tagger_forward_batched(params, x)
    outB = jax.block_until_ready(outB)
    refB = jnp.stack([reference_forward(x[b], w_ih, w_hh, b_ih, b_hh, w_tag, b_tag)
                      for b in range(B)])
    assert outB.shape == (B, T, TAGSET)
    assert jnp.allclose(outB, refB, rtol=1e-3, atol=1e-3), "batched mismatch"

    print("KERNEL_OK")
</pallas_src>

<mosaic_0001>
module attributes {stable_mosaic.version = 11 : i64} {
  func.func @lstm_tagger_kernel(%arg0: memref<8x32xf32, #tpu.memory_space<vmem>>, %arg1: memref<32x128xf32, #tpu.memory_space<vmem>>, %arg2: memref<32x128xf32, #tpu.memory_space<vmem>>, %arg3: memref<1x128xf32, #tpu.memory_space<vmem>>, %arg4: memref<32x128xf32, #tpu.memory_space<vmem>>, %arg5: memref<1x128xf32, #tpu.memory_space<vmem>>, %arg6: memref<8x128xf32, #tpu.memory_space<vmem>>, %arg7: memref<8x128xf32, #tpu.memory_space<vmem>>, %arg8: memref<8x32xf32, #tpu.memory_space<vmem>>) attributes {dimension_semantics = [], scalar_prefetch = 0 : i64, scratch_operands = 2 : i64, tpu.core_type = #tpu.core_type<tc>} {
    %c0 = arith.constant 0 : index
    %c0_0 = arith.constant 0 : index
    %0 = vector.load %arg0[%c0, %c0_0] : memref<8x32xf32, #tpu.memory_space<vmem>>, vector<8x32xf32>
    %c0_1 = arith.constant 0 : index
    %c0_2 = arith.constant 0 : index
    %1 = vector.load %arg1[%c0_1, %c0_2] : memref<32x128xf32, #tpu.memory_space<vmem>>, vector<32x128xf32>
    %cst = arith.constant dense<0.000000e+00> : vector<8x128xf32>
    %2 = tpu.matmul %0, %1, %cst {dimension_numbers = #tpu.dot_dimension_numbers<[1], [0], [0], [1], [0, 0, 1, 1], [], []>} : vector<8x32xf32>, vector<32x128xf32>, vector<8x128xf32> -> vector<8x128xf32>
    %c0_3 = arith.constant 0 : index
    %c0_4 = arith.constant 0 : index
    %3 = vector.load %arg3[%c0_3, %c0_4] : memref<1x128xf32, #tpu.memory_space<vmem>>, vector<1x128xf32>
    %4 = vector.broadcast %3 : vector<1x128xf32> to vector<8x128xf32>
    %5 = arith.addf %2, %4 : vector<8x128xf32>
    %c0_5 = arith.constant 0 : index
    %c0_6 = arith.constant 0 : index
    %6 = vector.load %arg7[%c0_5, %c0_6] : memref<8x128xf32, #tpu.memory_space<vmem>>, vector<8x128xf32>
    tpu.vector_store %arg7[%c0_5, %c0_6], %5 {strides = array<i32>} : memref<8x128xf32, #tpu.memory_space<vmem>>, vector<8x128xf32>,
    %c0_7 = arith.constant 0 : index
    %c0_8 = arith.constant 0 : index
    %7 = vector.load %arg2[%c0_7, %c0_8] : memref<32x128xf32, #tpu.memory_space<vmem>>, vector<32x128xf32>
    %8 = tpu.iota {dimensions = array<i32: 1>} : vector<1x128xi32>
    %c64_i32 = arith.constant 64 : i32
    %9 = vector.broadcast %c64_i32 : i32 to vector<1x128xi32>
    %10 = arith.cmpi sge, %8, %9 : vector<1x128xi32>
    %c96_i32 = arith.constant 96 : i32
    %11 = vector.broadcast %c96_i32 : i32 to vector<1x128xi32>
    %12 = arith.cmpi slt, %8, %11 : vector<1x128xi32>
    %13 = arith.andi %10, %12 : vector<1x128xi1>
    %cst_9 = arith.constant 0.000000e+00 : f32
    %14 = vector.broadcast %cst_9 : f32 to vector<1x32xf32>
    %cst_10 = arith.constant 0.000000e+00 : f32
    %15 = vector.broadcast %cst_10 : f32 to vector<1x32xf32>
    %c0_i32 = arith.constant 0 : i32
    %c1_i32 = arith.constant 1 : i32
    %16 = arith.muli %c0_i32, %c1_i32 : i32
    %17 = tpu.assume_multiple %16, 1 : i32
    %18 = arith.index_cast %17 : i32 to index
    %c0_11 = arith.constant 0 : index
    %19 = vector.load %arg7[%18, %c0_11] : memref<8x128xf32, #tpu.memory_space<vmem>>, vector<1x128xf32>
    %cst_12 = arith.constant dense<0.000000e+00> : vector<1x128xf32>
    %20 = tpu.matmul %14, %7, %cst_12 {dimension_numbers = #tpu.dot_dimension_numbers<[1], [0], [0], [1], [0, 0, 1, 1], [], []>} : vector<1x32xf32>, vector<32x128xf32>, vector<1x128xf32> -> vector<1x128xf32>
    %21 = arith.addf %19, %20 : vector<1x128xf32>
    %22 = math.tanh %21 : vector<1x128xf32>
    %cst_13 = arith.constant 5.000000e-01 : f32
    %23 = vector.broadcast %cst_13 : f32 to vector<1x128xf32>
    %24 = arith.mulf %23, %22 : vector<1x128xf32>
    %cst_14 = arith.constant 5.000000e-01 : f32
    %25 = vector.broadcast %cst_14 : f32 to vector<1x128xf32>
    %26 = arith.addf %24, %25 : vector<1x128xf32>
    %27 = arith.select %13, %22, %26 : vector<1x128xi1>, vector<1x128xf32>
    %28 = vector.extract_strided_slice %27 {offsets = [0, 0], sizes = [1, 32], strides = [1, 1]} : vector<1x128xf32> to vector<1x32xf32>
    %29 = vector.extract_strided_slice %27 {offsets = [0, 32], sizes = [1, 32], strides = [1, 1]} : vector<1x128xf32> to vector<1x32xf32>
    %30 = vector.extract_strided_slice %27 {offsets = [0, 64], sizes = [1, 32], strides = [1, 1]} : vector<1x128xf32> to vector<1x32xf32>
    %31 = vector.extract_strided_slice %27 {offsets = [0, 96], sizes = [1, 32], strides = [1, 1]} : vector<1x128xf32> to vector<1x32xf32>
    %32 = arith.mulf %29, %15 : vector<1x32xf32>
    %33 = arith.mulf %28, %30 : vector<1x32xf32>
    %34 = arith.addf %32, %33 : vector<1x32xf32>
    %35 = math.tanh %34 : vector<1x32xf32>
    %36 = arith.mulf %31, %35 : vector<1x32xf32>
    %37 = arith.index_cast %17 : i32 to index
    %c0_15 = arith.constant 0 : index
    %38 = vector.load %arg8[%37, %c0_15] : memref<8x32xf32, #tpu.memory_space<vmem>>, vector<1x32xf32>
    tpu.vector_store %arg8[%37, %c0_15], %36 {strides = array<i32>} : memref<8x32xf32, #tpu.memory_space<vmem>>, vector<1x32xf32>,
    %c1_i32_16 = arith.constant 1 : i32
    %c1_i32_17 = arith.constant 1 : i32
    %39 = arith.muli %c1_i32_16, %c1_i32_17 : i32
    %40 = tpu.assume_multiple %39, 1 : i32
    %41 = arith.index_cast %40 : i32 to index
    %c0_18 = arith.constant 0 : index
    %42 = vector.load %arg7[%41, %c0_18] : memref<8x128xf32, #tpu.memory_space<vmem>>, vector<1x128xf32>
    %cst_19 = arith.constant dense<0.000000e+00> : vector<1x128xf32>
    %43 = tpu.matmul %36, %7, %cst_19 {dimension_numbers = #tpu.dot_dimension_numbers<[1], [0], [0], [1], [0, 0, 1, 1], [], []>} : vector<1x32xf32>, vector<32x128xf32>, vector<1x128xf32> -> vector<1x128xf32>
    %44 = arith.addf %42, %43 : vector<1x128xf32>
    %45 = math.tanh %44 : vector<1x128xf32>
    %cst_20 = arith.constant 5.000000e-01 : f32
    %46 = vector.broadcast %cst_20 : f32 to vector<1x128xf32>
    %47 = arith.mulf %46, %45 : vector<1x128xf32>
    %cst_21 = arith.constant 5.000000e-01 : f32
    %48 = vector.broadcast %cst_21 : f32 to vector<1x128xf32>
    %49 = arith.addf %47, %48 : vector<1x128xf32>
    %50 = arith.select %13, %45, %49 : vector<1x128xi1>, vector<1x128xf32>
    %51 = vector.extract_strided_slice %50 {offsets = [0, 0], sizes = [1, 32], strides = [1, 1]} : vector<1x128xf32> to vector<1x32xf32>
    %52 = vector.extract_strided_slice %50 {offsets = [0, 32], sizes = [1, 32], strides = [1, 1]} : vector<1x128xf32> to vector<1x32xf32>
    %53 = vector.extract_strided_slice %50 {offsets = [0, 64], sizes = [1, 32], strides = [1, 1]} : vector<1x128xf32> to vector<1x32xf32>
    %54 = vector.extract_strided_slice %50 {offsets = [0, 96], sizes = [1, 32], strides = [1, 1]} : vector<1x128xf32> to vector<1x32xf32>
    %55 = arith.mulf %52, %34 : vector<1x32xf32>
    %56 = arith.mulf %51, %53 : vector<1x32xf32>
    %57 = arith.addf %55, %56 : vector<1x32xf32>
    %58 = math.tanh %57 : vector<1x32xf32>
    %59 = arith.mulf %54, %58 : vector<1x32xf32>
    %60 = arith.index_cast %40 : i32 to index
    %c0_22 = arith.constant 0 : index
    %61 = vector.load %arg8[%60, %c0_22] : memref<8x32xf32, #tpu.memory_space<vmem>>, vector<1x32xf32>
    tpu.vector_store %arg8[%60, %c0_22], %59 {strides = array<i32>} : memref<8x32xf32, #tpu.memory_space<vmem>>, vector<1x32xf32>,
    %c2_i32 = arith.constant 2 : i32
    %c1_i32_23 = arith.constant 1 : i32
    %62 = arith.muli %c2_i32, %c1_i32_23 : i32
    %63 = tpu.assume_multiple %62, 1 : i32
    %64 = arith.index_cast %63 : i32 to index
    %c0_24 = arith.constant 0 : index
    %65 = vector.load %arg7[%64, %c0_24] : memref<8x128xf32, #tpu.memory_space<vmem>>, vector<1x128xf32>
    %cst_25 = arith.constant dense<0.000000e+00> : vector<1x128xf32>
    %66 = tpu.matmul %59, %7, %cst_25 {dimension_numbers = #tpu.dot_dimension_numbers<[1], [0], [0], [1], [0, 0, 1, 1], [], []>} : vector<1x32xf32>, vector<32x128xf32>, vector<1x128xf32> -> vector<1x128xf32>
    %67 = arith.addf %65, %66 : vector<1x128xf32>
    %68 = math.tanh %67 : vector<1x128xf32>
    %cst_26 = arith.constant 5.000000e-01 : f32
    %69 = vector.broadcast %cst_26 : f32 to vector<1x128xf32>
    %70 = arith.mulf %69, %68 : vector<1x128xf32>
    %cst_27 = arith.constant 5.000000e-01 : f32
    %71 = vector.broadcast %cst_27 : f32 to vector<1x128xf32>
    %72 = arith.addf %70, %71 : vector<1x128xf32>
    %73 = arith.select %13, %68, %72 : vector<1x128xi1>, vector<1x128xf32>
    %74 = vector.extract_strided_slice %73 {offsets = [0, 0], sizes = [1, 32], strides = [1, 1]} : vector<1x128xf32> to vector<1x32xf32>
    %75 = vector.extract_strided_slice %73 {offsets = [0, 32], sizes = [1, 32], strides = [1, 1]} : vector<1x128xf32> to vector<1x32xf32>
    %76 = vector.extract_strided_slice %73 {offsets = [0, 64], sizes = [1, 32], strides = [1, 1]} : vector<1x128xf32> to vector<1x32xf32>
    %77 = vector.extract_strided_slice %73 {offsets = [0, 96], sizes = [1, 32], strides = [1, 1]} : vector<1x128xf32> to vector<1x32xf32>
    %78 = arith.mulf %75, %57 : vector<1x32xf32>
    %79 = arith.mulf %74, %76 : vector<1x32xf32>
    %80 = arith.addf %78, %79 : vector<1x32xf32>
    %81 = math.tanh %80 : vector<1x32xf32>
    %82 = arith.mulf %77, %81 : vector<1x32xf32>
    %83 = arith.index_cast %63 : i32 to index
    %c0_28 = arith.constant 0 : index
    %84 = vector.load %arg8[%83, %c0_28] : memref<8x32xf32, #tpu.memory_space<vmem>>, vector<1x32xf32>
    tpu.vector_store %arg8[%83, %c0_28], %82 {strides = array<i32>} : memref<8x32xf32, #tpu.memory_space<vmem>>, vector<1x32xf32>,
    %c3_i32 = arith.constant 3 : i32
    %c1_i32_29 = arith.constant 1 : i32
    %85 = arith.muli %c3_i32, %c1_i32_29 : i32
    %86 = tpu.assume_multiple %85, 1 : i32
    %87 = arith.index_cast %86 : i32 to index
    %c0_30 = arith.constant 0 : index
    %88 = vector.load %arg7[%87, %c0_30] : memref<8x128xf32, #tpu.memory_space<vmem>>, vector<1x128xf32>
    %cst_31 = arith.constant dense<0.000000e+00> : vector<1x128xf32>
    %89 = tpu.matmul %82, %7, %cst_31 {dimension_numbers = #tpu.dot_dimension_numbers<[1], [0], [0], [1], [0, 0, 1, 1], [], []>} : vector<1x32xf32>, vector<32x128xf32>, vector<1x128xf32> -> vector<1x128xf32>
    %90 = arith.addf %88, %89 : vector<1x128xf32>
    %91 = math.tanh %90 : vector<1x128xf32>
    %cst_32 = arith.constant 5.000000e-01 : f32
    %92 = vector.broadcast %cst_32 : f32 to vector<1x128xf32>
    %93 = arith.mulf %92, %91 : vector<1x128xf32>
    %cst_33 = arith.constant 5.000000e-01 : f32
    %94 = vector.broadcast %cst_33 : f32 to vector<1x128xf32>
    %95 = arith.addf %93, %94 : vector<1x128xf32>
    %96 = arith.select %13, %91, %95 : vector<1x128xi1>, vector<1x128xf32>
    %97 = vector.extract_strided_slice %96 {offsets = [0, 0], sizes = [1, 32], strides = [1, 1]} : vector<1x128xf32> to vector<1x32xf32>
    %98 = vector.extract_strided_slice %96 {offsets = [0, 32], sizes = [1, 32], strides = [1, 1]} : vector<1x128xf32> to vector<1x32xf32>
    %99 = vector.extract_strided_slice %96 {offsets = [0, 64], sizes = [1, 32], strides = [1, 1]} : vector<1x128xf32> to vector<1x32xf32>
    %100 = vector.extract_strided_slice %96 {offsets = [0, 96], sizes = [1, 32], strides = [1, 1]} : vector<1x128xf32> to vector<1x32xf32>
    %101 = arith.mulf %98, %80 : vector<1x32xf32>
    %102 = arith.mulf %97, %99 : vector<1x32xf32>
    %103 = arith.addf %101, %102 : vector<1x32xf32>
    %104 = math.tanh %103 : vector<1x32xf32>
    %105 = arith.mulf %100, %104 : vector<1x32xf32>
    %106 = arith.index_cast %86 : i32 to index
    %c0_34 = arith.constant 0 : index
    %107 = vector.load %arg8[%106, %c0_34] : memref<8x32xf32, #tpu.memory_space<vmem>>, vector<1x32xf32>
    tpu.vector_store %arg8[%106, %c0_34], %105 {strides = array<i32>} : memref<8x32xf32, #tpu.memory_space<vmem>>, vector<1x32xf32>,
    %c4_i32 = arith.constant 4 : i32
    %c1_i32_35 = arith.constant 1 : i32
    %108 = arith.muli %c4_i32, %c1_i32_35 : i32
    %109 = tpu.assume_multiple %108, 1 : i32
    %110 = arith.index_cast %109 : i32 to index
    %c0_36 = arith.constant 0 : index
    %111 = vector.load %arg7[%110, %c0_36] : memref<8x128xf32, #tpu.memory_space<vmem>>, vector<1x128xf32>
    %cst_37 = arith.constant dense<0.000000e+00> : vector<1x128xf32>
    %112 = tpu.matmul %105, %7, %cst_37 {dimension_numbers = #tpu.dot_dimension_numbers<[1], [0], [0], [1], [0, 0, 1, 1], [], []>} : vector<1x32xf32>, vector<32x128xf32>, vector<1x128xf32> -> vector<1x128xf32>
    %113 = arith.addf %111, %112 : vector<1x128xf32>
    %114 = math.tanh %113 : vector<1x128xf32>
    %cst_38 = arith.constant 5.000000e-01 : f32
    %115 = vector.broadcast %cst_38 : f32 to vector<1x128xf32>
    %116 = arith.mulf %115, %114 : vector<1x128xf32>
    %cst_39 = arith.constant 5.000000e-01 : f32
    %117 = vector.broadcast %cst_39 : f32 to vector<1x128xf32>
    %118 = arith.addf %116, %117 : vector<1x128xf32>
    %119 = arith.select %13, %114, %118 : vector<1x128xi1>, vector<1x128xf32>
    %120 = vector.extract_strided_slice %119 {offsets = [0, 0], sizes = [1, 32], strides = [1, 1]} : vector<1x128xf32> to vector<1x32xf32>
    %121 = vector.extract_strided_slice %119 {offsets = [0, 32], sizes = [1, 32], strides = [1, 1]} : vector<1x128xf32> to vector<1x32xf32>
    %122 = vector.extract_strided_slice %119 {offsets = [0, 64], sizes = [1, 32], strides = [1, 1]} : vector<1x128xf32> to vector<1x32xf32>
    %123 = vector.extract_strided_slice %119 {offsets = [0, 96], sizes = [1, 32], strides = [1, 1]} : vector<1x128xf32> to vector<1x32xf32>
    %124 = arith.mulf %121, %103 : vector<1x32xf32>
    %125 = arith.mulf %120, %122 : vector<1x32xf32>
    %126 = arith.addf %124, %125 : vector<1x32xf32>
    %127 = math.tanh %126 : vector<1x32xf32>
    %128 = arith.mulf %123, %127 : vector<1x32xf32>
    %129 = arith.index_cast %109 : i32 to index
    %c0_40 = arith.constant 0 : index
    %130 = vector.load %arg8[%129, %c0_40] : memref<8x32xf32, #tpu.memory_space<vmem>>, vector<1x32xf32>
    tpu.vector_store %arg8[%129, %c0_40], %128 {strides = array<i32>} : memref<8x32xf32, #tpu.memory_space<vmem>>, vector<1x32xf32>,
    %c5_i32 = arith.constant 5 : i32
    %c1_i32_41 = arith.constant 1 : i32
    %131 = arith.muli %c5_i32, %c1_i32_41 : i32
    %132 = tpu.assume_multiple %131, 1 : i32
    %133 = arith.index_cast %132 : i32 to index
    %c0_42 = arith.constant 0 : index
    %134 = vector.load %arg7[%133, %c0_42] : memref<8x128xf32, #tpu.memory_space<vmem>>, vector<1x128xf32>
    %cst_43 = arith.constant dense<0.000000e+00> : vector<1x128xf32>
    %135 = tpu.matmul %128, %7, %cst_43 {dimension_numbers = #tpu.dot_dimension_numbers<[1], [0], [0], [1], [0, 0, 1, 1], [], []>} : vector<1x32xf32>, vector<32x128xf32>, vector<1x128xf32> -> vector<1x128xf32>
    %136 = arith.addf %134, %135 : vector<1x128xf32>
    %137 = math.tanh %136 : vector<1x128xf32>
    %cst_44 = arith.constant 5.000000e-01 : f32
    %138 = vector.broadcast %cst_44 : f32 to vector<1x128xf32>
    %139 = arith.mulf %138, %137 : vector<1x128xf32>
    %cst_45 = arith.constant 5.000000e-01 : f32
    %140 = vector.broadcast %cst_45 : f32 to vector<1x128xf32>
    %141 = arith.addf %139, %140 : vector<1x128xf32>
    %142 = arith.select %13, %137, %141 : vector<1x128xi1>, vector<1x128xf32>
    %143 = vector.extract_strided_slice %142 {offsets = [0, 0], sizes = [1, 32], strides = [1, 1]} : vector<1x128xf32> to vector<1x32xf32>
    %144 = vector.extract_strided_slice %142 {offsets = [0, 32], sizes = [1, 32], strides = [1, 1]} : vector<1x128xf32> to vector<1x32xf32>
    %145 = vector.extract_strided_slice %142 {offsets = [0, 64], sizes = [1, 32], strides = [1, 1]} : vector<1x128xf32> to vector<1x32xf32>
    %146 = vector.extract_strided_slice %142 {offsets = [0, 96], sizes = [1, 32], strides = [1, 1]} : vector<1x128xf32> to vector<1x32xf32>
    %147 = arith.mulf %144, %126 : vector<1x32xf32>
    %148 = arith.mulf %143, %145 : vector<1x32xf32>
    %149 = arith.addf %147, %148 : vector<1x32xf32>
    %150 = math.tanh %149 : vector<1x32xf32>
    %151 = arith.mulf %146, %150 : vector<1x32xf32>
    %152 = arith.index_cast %132 : i32 to index
    %c0_46 = arith.constant 0 : index
    %153 = vector.load %arg8[%152, %c0_46] : memref<8x32xf32, #tpu.memory_space<vmem>>, vector<1x32xf32>
    tpu.vector_store %arg8[%152, %c0_46], %151 {strides = array<i32>} : memref<8x32xf32, #tpu.memory_space<vmem>>, vector<1x32xf32>,
    %c6_i32 = arith.constant 6 : i32
    %c1_i32_47 = arith.constant 1 : i32
    %154 = arith.muli %c6_i32, %c1_i32_47 : i32
    %155 = tpu.assume_multiple %154, 1 : i32
    %156 = arith.index_cast %155 : i32 to index
    %c0_48 = arith.constant 0 : index
    %157 = vector.load %arg7[%156, %c0_48] : memref<8x128xf32, #tpu.memory_space<vmem>>, vector<1x128xf32>
    %cst_49 = arith.constant dense<0.000000e+00> : vector<1x128xf32>
    %158 = tpu.matmul %151, %7, %cst_49 {dimension_numbers = #tpu.dot_dimension_numbers<[1], [0], [0], [1], [0, 0, 1, 1], [], []>} : vector<1x32xf32>, vector<32x128xf32>, vector<1x128xf32> -> vector<1x128xf32>
    %159 = arith.addf %157, %158 : vector<1x128xf32>
    %160 = math.tanh %159 : vector<1x128xf32>
    %cst_50 = arith.constant 5.000000e-01 : f32
    %161 = vector.broadcast %cst_50 : f32 to vector<1x128xf32>
    %162 = arith.mulf %161, %160 : vector<1x128xf32>
    %cst_51 = arith.constant 5.000000e-01 : f32
    %163 = vector.broadcast %cst_51 : f32 to vector<1x128xf32>
    %164 = arith.addf %162, %163 : vector<1x128xf32>
    %165 = arith.select %13, %160, %164 : vector<1x128xi1>, vector<1x128xf32>
    %166 = vector.extract_strided_slice %165 {offsets = [0, 0], sizes = [1, 32], strides = [1, 1]} : vector<1x128xf32> to vector<1x32xf32>
    %167 = vector.extract_strided_slice %165 {offsets = [0, 32], sizes = [1, 32], strides = [1, 1]} : vector<1x128xf32> to vector<1x32xf32>
    %168 = vector.extract_strided_slice %165 {offsets = [0, 64], sizes = [1, 32], strides = [1, 1]} : vector<1x128xf32> to vector<1x32xf32>
    %169 = vector.extract_strided_slice %165 {offsets = [0, 96], sizes = [1, 32], strides = [1, 1]} : vector<1x128xf32> to vector<1x32xf32>
    %170 = arith.mulf %167, %149 : vector<1x32xf32>
    %171 = arith.mulf %166, %168 : vector<1x32xf32>
    %172 = arith.addf %170, %171 : vector<1x32xf32>
    %173 = math.tanh %172 : vector<1x32xf32>
    %174 = arith.mulf %169, %173 : vector<1x32xf32>
    %175 = arith.index_cast %155 : i32 to index
    %c0_52 = arith.constant 0 : index
    %176 = vector.load %arg8[%175, %c0_52] : memref<8x32xf32, #tpu.memory_space<vmem>>, vector<1x32xf32>
    tpu.vector_store %arg8[%175, %c0_52], %174 {strides = array<i32>} : memref<8x32xf32, #tpu.memory_space<vmem>>, vector<1x32xf32>,
    %c7_i32 = arith.constant 7 : i32
    %c1_i32_53 = arith.constant 1 : i32
    %177 = arith.muli %c7_i32, %c1_i32_53 : i32
    %178 = tpu.assume_multiple %177, 1 : i32
    %179 = arith.index_cast %178 : i32 to index
    %c0_54 = arith.constant 0 : index
    %180 = vector.load %arg7[%179, %c0_54] : memref<8x128xf32, #tpu.memory_space<vmem>>, vector<1x128xf32>
    %cst_55 = arith.constant dense<0.000000e+00> : vector<1x128xf32>
    %181 = tpu.matmul %174, %7, %cst_55 {dimension_numbers = #tpu.dot_dimension_numbers<[1], [0], [0], [1], [0, 0, 1, 1], [], []>} : vector<1x32xf32>, vector<32x128xf32>, vector<1x128xf32> -> vector<1x128xf32>
    %182 = arith.addf %180, %181 : vector<1x128xf32>
    %183 = math.tanh %182 : vector<1x128xf32>
    %cst_56 = arith.constant 5.000000e-01 : f32
    %184 = vector.broadcast %cst_56 : f32 to vector<1x128xf32>
    %185 = arith.mulf %184, %183 : vector<1x128xf32>
    %cst_57 = arith.constant 5.000000e-01 : f32
    %186 = vector.broadcast %cst_57 : f32 to vector<1x128xf32>
    %187 = arith.addf %185, %186 : vector<1x128xf32>
    %188 = arith.select %13, %183, %187 : vector<1x128xi1>, vector<1x128xf32>
    %189 = vector.extract_strided_slice %188 {offsets = [0, 0], sizes = [1, 32], strides = [1, 1]} : vector<1x128xf32> to vector<1x32xf32>
    %190 = vector.extract_strided_slice %188 {offsets = [0, 32], sizes = [1, 32], strides = [1, 1]} : vector<1x128xf32> to vector<1x32xf32>
    %191 = vector.extract_strided_slice %188 {offsets = [0, 64], sizes = [1, 32], strides = [1, 1]} : vector<1x128xf32> to vector<1x32xf32>
    %192 = vector.extract_strided_slice %188 {offsets = [0, 96], sizes = [1, 32], strides = [1, 1]} : vector<1x128xf32> to vector<1x32xf32>
    %193 = arith.mulf %190, %172 : vector<1x32xf32>
    %194 = arith.mulf %189, %191 : vector<1x32xf32>
    %195 = arith.addf %193, %194 : vector<1x32xf32>
    %196 = math.tanh %195 : vector<1x32xf32>
    %197 = arith.mulf %192, %196 : vector<1x32xf32>
    %198 = arith.index_cast %178 : i32 to index
    %c0_58 = arith.constant 0 : index
    %199 = vector.load %arg8[%198, %c0_58] : memref<8x32xf32, #tpu.memory_space<vmem>>, vector<1x32xf32>
    tpu.vector_store %arg8[%198, %c0_58], %197 {strides = array<i32>} : memref<8x32xf32, #tpu.memory_space<vmem>>, vector<1x32xf32>,
    %c8_i32 = arith.constant 8 : i32
    %c0_59 = arith.constant 0 : index
    %c0_60 = arith.constant 0 : index
    %200 = vector.load %arg8[%c0_59, %c0_60] : memref<8x32xf32, #tpu.memory_space<vmem>>, vector<8x32xf32>
    %c0_61 = arith.constant 0 : index
    %c0_62 = arith.constant 0 : index
    %201 = vector.load %arg4[%c0_61, %c0_62] : memref<32x128xf32, #tpu.memory_space<vmem>>, vector<32x128xf32>
    %cst_63 = arith.constant dense<0.000000e+00> : vector<8x128xf32>
    %202 = tpu.matmul %200, %201, %cst_63 {dimension_numbers = #tpu.dot_dimension_numbers<[1], [0], [0], [1], [0, 0, 1, 1], [], []>} : vector<8x32xf32>, vector<32x128xf32>, vector<8x128xf32> -> vector<8x128xf32>
    %c0_64 = arith.constant 0 : index
    %c0_65 = arith.constant 0 : index
    %203 = vector.load %arg5[%c0_64, %c0_65] : memref<1x128xf32, #tpu.memory_space<vmem>>, vector<1x128xf32>
    %204 = vector.broadcast %203 : vector<1x128xf32> to vector<8x128xf32>
    %205 = arith.addf %202, %204 : vector<8x128xf32>
    %cst_66 = arith.constant dense<0xFF800000> : vector<8xf32>
    %206 = vector.multi_reduction <maximumf>, %205, %cst_66 [1] : vector<8x128xf32> to vector<8xf32>
    %207 = vector.shape_cast %206 : vector<8xf32> to vector<8x1xf32>
    %208 = vector.broadcast %207 : vector<8x1xf32> to vector<8x128xf32>
    %209 = arith.subf %205, %208 : vector<8x128xf32>
    %210 = math.exp %209 : vector<8x128xf32>
    %cst_67 = arith.constant dense<0.000000e+00> : vector<8xf32>
    %211 = vector.multi_reduction <add>, %210, %cst_67 [1] : vector<8x128xf32> to vector<8xf32>
    %212 = vector.shape_cast %211 : vector<8xf32> to vector<8x1xf32>
    %213 = math.log %212 : vector<8x1xf32>
    %214 = arith.addf %207, %213 : vector<8x1xf32>
    %215 = vector.broadcast %214 : vector<8x1xf32> to vector<8x128xf32>
    %216 = arith.subf %205, %215 : vector<8x128xf32>
    %c0_68 = arith.constant 0 : index
    %c0_69 = arith.constant 0 : index
    %217 = vector.load %arg6[%c0_68, %c0_69] : memref<8x128xf32, #tpu.memory_space<vmem>>, vector<8x128xf32>
    tpu.vector_store %arg6[%c0_68, %c0_69], %216 {strides = array<i32>} : memref<8x128xf32, #tpu.memory_space<vmem>>, vector<8x128xf32>,
    return
  }
}

</mosaic_0001>

<llo_original>
// kernel: tpu_custom_call.1
$region0: #{tpu_custom_call.1}
  #allocation0 [shape = 'u32[]', space=smem, size = 0x4, offset = 0x4, fixed_abs, tag = 'smem constant byte address 0x4 - core index']
  #allocation1 [shape = 'u32[144,128]{1,0:T(1,128)}', space=vmem, size = 0x12000, scoped, tag = 'internal scratch']
  #allocation2 [shape = 'f32[8,128]{1,0:T(8,128)}', space=vmem, size = 0x1000, scoped, tag = 'scratch operand']
  #allocation3 [shape = 'f32[8,32]{1,0:T(8,128)}', space=vmem, size = 0x1000, scoped, tag = 'scratch operand']
  %s0 = inlined_call_operand.hbm [shape: f32[8,32], index: 0, kind: input, shape index: {}]
  %s1 = inlined_call_operand.hbm [shape: f32[32,128], index: 1, kind: input, shape index: {}]
  %s2 = inlined_call_operand.hbm [shape: f32[32,128], index: 2, kind: input, shape index: {}]
  %s3 = inlined_call_operand.vmem [shape: f32[1,128], index: 3, kind: input, shape index: {}]
  %s4 = inlined_call_operand.hbm [shape: f32[32,128], index: 4, kind: input, shape index: {}]
  %s5 = inlined_call_operand.vmem [shape: f32[1,128], index: 5, kind: input, shape index: {}]
  %s6 = inlined_call_operand.hbm [shape: f32[8,128], index: 6, kind: output, shape index: {}]
  %s7 = sld [smem:[#allocation0]]
  $region50: #{tpu_custom_call.1} parent=0
    _
  %s9 = ssub.s32 1, %s7
  %s10 = scalar_select 0, %s9, %s7
  $region1: #{tpu_custom_call.1} parent=0
    #allocation4 [shape = 'u8[4096]{0}', space=vmem, size = 0x1000, scoped, tag = 'input window, operand 0, single buffered']
    #allocation5 [shape = 's32[1]{0}', space=sflag, size = 0x4, scoped, tag = 'scoped memory for tpu_custom_call.1']
    #allocation6 [shape = 's32[1]{0}', space=sflag, size = 0x4, scoped, tag = 'scoped memory for tpu_custom_call.1']
    #allocation7 [shape = 'u8[16384]{0}', space=vmem, size = 0x4000, scoped, tag = 'input window, operand 1, single buffered']
    #allocation8 [shape = 's32[1]{0}', space=sflag, size = 0x4, scoped, tag = 'scoped memory for tpu_custom_call.1']
    #allocation9 [shape = 'u8[16384]{0}', space=vmem, size = 0x4000, scoped, tag = 'input window, operand 2, single buffered']
    #allocation10 [shape = 'u8[16384]{0}', space=vmem, size = 0x4000, scoped, tag = 'input window, operand 4, single buffered']
    #allocation11 [shape = 's32[1]{0}', space=sflag, size = 0x4, scoped, tag = 'scoped memory for tpu_custom_call.1']
    #allocation12 [shape = 'u8[4096]{0}', space=vmem, size = 0x1000, scoped, tag = 'output window, operand 0, single buffered']
    %11 = vsyncpa [#allocation5], 0
    %12 = vsyncpa [#allocation8], 0
    %13 = vsyncpa [#allocation11], 0
    %14 = vsyncpa [#allocation6], 0
    // Predicated region
    $region2: #{tpu_custom_call.1} parent=1 // pred_check
      _
    $region3: #{tpu_custom_call.1} parent=1 // pred_check_branch
      %16 = sbr.rel (0) target = $region5
    $region4: #{tpu_custom_call.1} parent=1 // pred_region
      %s18 = ssub.s32 128, 128
      %19 = vsyncadd [#allocation5], %s18
      %s21 = sshll.u32 [#allocation4], 4
      %s22 = int_to_ptr.vmem [resolvable:$true] %s21
      %24 = dma.hbm_to_vmem [thread:$0]  %s0, 128, %s22, [#allocation5]
    $region5: #{tpu_custom_call.1} parent=1 // pred_fallthru
      _
    // Predicated region
    $region6: #{tpu_custom_call.1} parent=1 // pred_check
      _
    $region7: #{tpu_custom_call.1} parent=1 // pred_check_branch
      %26 = sbr.rel (0) target = $region9
    $region8: #{tpu_custom_call.1} parent=1 // pred_region
      %s28 = ssub.s32 512, 512
      %29 = vsyncadd [#allocation8], %s28
      %s30 = sshll.u32 [#allocation7], 4
      %s31 = int_to_ptr.vmem [resolvable:$true] %s30
      %36 = dma.hbm_to_vmem [thread:$0]  %s1, 512, %s31, [#allocation8], 128, 128, 8
    $region9: #{tpu_custom_call.1} parent=1 // pred_fallthru
      _
    // Predicated region
    $region10: #{tpu_custom_call.1} parent=1 // pred_check
      _
    $region11: #{tpu_custom_call.1} parent=1 // pred_check_branch
      %38 = sbr.rel (0) target = $region13
    $region12: #{tpu_custom_call.1} parent=1 // pred_region
      %s40 = ssub.s32 512, 512
      %41 = vsyncadd [#allocation8], %s40
      %s42 = sshll.u32 [#allocation9], 4
      %s43 = int_to_ptr.vmem [resolvable:$true] %s42
      %48 = dma.hbm_to_vmem [thread:$0]  %s2, 512, %s43, [#allocation8], 128, 128, 8
    $region13: #{tpu_custom_call.1} parent=1 // pred_fallthru
      _
    // Predicated region
    $region14: #{tpu_custom_call.1} parent=1 // pred_check
      _
    $region15: #{tpu_custom_call.1} parent=1 // pred_check_branch
      %50 = sbr.rel (0) target = $region17
    $region16: #{tpu_custom_call.1} parent=1 // pred_region
      _
    $region17: #{tpu_custom_call.1} parent=1 // pred_fallthru
      _
    // Predicated region
    $region18: #{tpu_custom_call.1} parent=1 // pred_check
      _
    $region19: #{tpu_custom_call.1} parent=1 // pred_check_branch
      %52 = sbr.rel (0) target = $region21
    $region20: #{tpu_custom_call.1} parent=1 // pred_region
      %s54 = ssub.s32 512, 512
      %55 = vsyncadd [#allocation11], %s54
      %s56 = sshll.u32 [#allocation10], 4
      %s57 = int_to_ptr.vmem [resolvable:$true] %s56
      %62 = dma.hbm_to_vmem [thread:$0]  %s4, 512, %s57, [#allocation11], 128, 128, 8
    $region21: #{tpu_custom_call.1} parent=1 // pred_fallthru
      _
    // Predicated region
    $region22: #{tpu_custom_call.1} parent=1 // pred_check
      _
    $region23: #{tpu_custom_call.1} parent=1 // pred_check_branch
      %64 = sbr.rel (0) target = $region25
    $region24: #{tpu_custom_call.1} parent=1 // pred_region
      _
    $region25: #{tpu_custom_call.1} parent=1 // pred_fallthru
      _
    // Predicated region
    $region26: #{tpu_custom_call.1} parent=1 // pred_check
      _
    $region27: #{tpu_custom_call.1} parent=1 // pred_check_branch
      %66 = sbr.rel (0) target = $region29
    $region28: #{tpu_custom_call.1} parent=1 // pred_region
      %67 = dma.done [#allocation5], 128
    $region29: #{tpu_custom_call.1} parent=1 // pred_fallthru
      _
    // Predicated region
    $region30: #{tpu_custom_call.1} parent=1 // pred_check
      _
    $region31: #{tpu_custom_call.1} parent=1 // pred_check_branch
      %69 = sbr.rel (0) target = $region33
    $region32: #{tpu_custom_call.1} parent=1 // pred_region
      %70 = dma.done [#allocation8], 512
    $region33: #{tpu_custom_call.1} parent=1 // pred_fallthru
      _
    // Predicated region
    $region34: #{tpu_custom_call.1} parent=1 // pred_check
      _
    $region35: #{tpu_custom_call.1} parent=1 // pred_check_branch
      %72 = sbr.rel (0) target = $region37
    $region36: #{tpu_custom_call.1} parent=1 // pred_region
      %73 = dma.done [#allocation8], 512
    $region37: #{tpu_custom_call.1} parent=1 // pred_fallthru
      _
    // Predicated region
    $region38: #{tpu_custom_call.1} parent=1 // pred_check
      _
    $region39: #{tpu_custom_call.1} parent=1 // pred_check_branch
      %75 = sbr.rel (0) target = $region41
    $region40: #{tpu_custom_call.1} parent=1 // pred_region
      %76 = dma.done [#allocation11], 512
    $region41: #{tpu_custom_call.1} parent=1 // pred_fallthru
      _
    %v77 = vld [vmem:[#allocation4] sm:$0xff]
    %v78 = vld [vmem:[#allocation7] sm:$0xff]
    %v79 = vld [vmem:[#allocation7 + $0x8] sm:$0xff]
    %v80 = vld [vmem:[#allocation7 + $0x10] sm:$0xff]
    %v81 = vld [vmem:[#allocation7 + $0x18] sm:$0xff]
    %v82 = vld [vmem:[%s3] sm:$0x1]
    %v84 = vlaneseq
    %v85 = vshrl.u32 %v84, 7
    %v86 = vsub.s32 0, %v85
    %v87 = vrot.slane %v82, %v86
    %vm89 = vcmask 261120
    %v91 = vsel %vm89, %v77, 0
    %93 = vmatprep.subr.mxu0 0.0
    %94 = vmatpush1.msra.mxu0 %v78
    %95 = vmatprep.subr.mxu0 0.0
    %96 = vmatpush1.msra.mxu0 %v79
    %97 = vmatprep.subr.mxu0 0.0
    %98 = vmatpush1.msra.mxu0 %v80
    %99 = vmatprep.subr.mxu0 0.0
    %100 = vmatpush1.msra.mxu0 %v81
    %101 = vmatprep.subr.mxu0 0.0
    %102 = vmatpush1.msra.mxu0 0.0
    %103 = vmatprep.subr.mxu0 0.0
    %104 = vmatpush1.msra.mxu0 0.0
    %105 = vmatprep.subr.mxu0 0.0
    %106 = vmatpush1.msra.mxu0 0.0
    %107 = vmatprep.subr.mxu0 0.0
    %108 = vmatpush1.msra.mxu0 0.0
    %109 = vmatprep.subr.mxu0 0.0
    %110 = vmatpush1.msra.mxu0 0.0
    %111 = vmatprep.subr.mxu0 0.0
    %112 = vmatpush1.msra.mxu0 0.0
    %113 = vmatprep.subr.mxu0 0.0
    %114 = vmatpush1.msra.mxu0 0.0
    %115 = vmatprep.subr.mxu0 0.0
    %116 = vmatpush1.msra.mxu0 0.0
    %117 = vmatprep.subr.mxu0 0.0
    %118 = vmatpush1.msra.mxu0 0.0
    %119 = vmatprep.subr.mxu0 0.0
    %120 = vmatpush1.msra.mxu0 0.0
    %121 = vmatprep.subr.mxu0 0.0
    %122 = vmatpush1.msra.mxu0 0.0
    %123 = vmatprep.subr.mxu0 0.0
    %124 = vmatpush1.msra.mxu0 0.0
    %125 = vmatprep.subr.mxu0 0.0
    %126 = vmatpush1.msra.mxu0 0.0
    %127 = vmatprep.subr.mxu0 0.0
    %128 = vmatpush1.msra.mxu0 0.0
    %129 = vmatprep.subr.mxu0 0.0
    %130 = vmatpush1.msra.mxu0 0.0
    %131 = vmatprep.subr.mxu0 0.0
    %132 = vmatpush1.msra.mxu0 0.0
    %133 = vmatprep.subr.mxu0 0.0
    %134 = vmatpush1.msra.mxu0 0.0
    %135 = vmatprep.subr.mxu0 0.0
    %136 = vmatpush1.msra.mxu0 0.0
    %137 = vmatprep.subr.mxu0 0.0
    %138 = vmatpush1.msra.mxu0 0.0
    %139 = vmatprep.subr.mxu0 0.0
    %140 = vmatpush1.msra.mxu0 0.0
    %141 = vmatprep.subr.mxu0 0.0
    %142 = vmatpush1.msra.mxu0 0.0
    %143 = vmatprep.subr.mxu0 0.0
    %144 = vmatpush1.msra.mxu0 0.0
    %145 = vmatprep.subr.mxu0 0.0
    %146 = vmatpush1.msra.mxu0 0.0
    %147 = vmatprep.subr.mxu0 0.0
    %148 = vmatpush1.msra.mxu0 0.0
    %149 = vmatprep.subr.mxu0 0.0
    %150 = vmatpush1.msra.mxu0 0.0
    %151 = vmatprep.subr.mxu0 0.0
    %152 = vmatpush1.msra.mxu0 0.0
    %153 = vmatprep.subr.mxu0 0.0
    %154 = vmatpush1.msra.mxu0 0.0
    %155 = vmatprep.subr.mxu0 0.0
    %156 = vmatpush1.msra.mxu0 0.0
    %157 = vmatprep.mubr.f32.mxu0 0.0
    %158 = vmatmul.mubr.f32.gmra.mrb[0].mxu0 %v91
    %v159 = vpop.f32.mrb[0].mxu0
    %v160 = vadd.f32 %v87, %v159
    %v161 = vpop.f32.mrb[0].mxu0
    %162 = vdwg.mxu0
    %163 = vst [vmem:[#allocation2] sm:$0xff] %v160
    %v164 = vld [vmem:[#allocation9] sm:$0xff]
    %v165 = vld [vmem:[#allocation9 + $0x8] sm:$0xff]
    %v166 = vld [vmem:[#allocation9 + $0x10] sm:$0xff]
    %v167 = vld [vmem:[#allocation9 + $0x18] sm:$0xff]
    %v168 = vlaneseq
    %v169 = vand.u32 %v168, 127
    %vm170 = vcmp.ge.s32.totalorder %v169, 64
    %vm171 = vcmp.lt.s32.totalorder %v169, 96
    %vm172 = vmand %vm170, %vm171
    %v173 = vld [vmem:[#allocation2] sm:$0x1]
    %v175 = vsel %vm89, 0.0, 0
    %177 = vmatprep.subr.mxu0 0.0
    %178 = vmatpush1.msra.mxu0 %v164
    %179 = vmatprep.subr.mxu0 0.0
    %180 = vmatpush1.msra.mxu0 %v165
    %181 = vmatprep.subr.mxu0 0.0
    %182 = vmatpush1.msra.mxu0 %v166
    %183 = vmatprep.subr.mxu0 0.0
    %184 = vmatpush1.msra.mxu0 %v167
    %185 = vmatprep.subr.mxu0 0.0
    %186 = vmatpush1.msra.mxu0 0.0
    %187 = vmatprep.subr.mxu0 0.0
    %188 = vmatpush1.msra.mxu0 0.0
    %189 = vmatprep.subr.mxu0 0.0
    %190 = vmatpush1.msra.mxu0 0.0
    %191 = vmatprep.subr.mxu0 0.0
    %192 = vmatpush1.msra.mxu0 0.0
    %193 = vmatprep.subr.mxu0 0.0
    %194 = vmatpush1.msra.mxu0 0.0
    %195 = vmatprep.subr.mxu0 0.0
    %196 = vmatpush1.msra.mxu0 0.0
    %197 = vmatprep.subr.mxu0 0.0
    %198 = vmatpush1.msra.mxu0 0.0
    %199 = vmatprep.subr.mxu0 0.0
    %200 = vmatpush1.msra.mxu0 0.0
    %201 = vmatprep.subr.mxu0 0.0
    %202 = vmatpush1.msra.mxu0 0.0
    %203 = vmatprep.subr.mxu0 0.0
    %204 = vmatpush1.msra.mxu0 0.0
    %205 = vmatprep.subr.mxu0 0.0
    %206 = vmatpush1.msra.mxu0 0.0
    %207 = vmatprep.subr.mxu0 0.0
    %208 = vmatpush1.msra.mxu0 0.0
    %209 = vmatprep.subr.mxu0 0.0
    %210 = vmatpush1.msra.mxu0 0.0
    %211 = vmatprep.subr.mxu0 0.0
    %212 = vmatpush1.msra.mxu0 0.0
    %213 = vmatprep.subr.mxu0 0.0
    %214 = vmatpush1.msra.mxu0 0.0
    %215 = vmatprep.subr.mxu0 0.0
    %216 = vmatpush1.msra.mxu0 0.0
    %217 = vmatprep.subr.mxu0 0.0
    %218 = vmatpush1.msra.mxu0 0.0
    %219 = vmatprep.subr.mxu0 0.0
    %220 = vmatpush1.msra.mxu0 0.0
    %221 = vmatprep.subr.mxu0 0.0
    %222 = vmatpush1.msra.mxu0 0.0
    %223 = vmatprep.subr.mxu0 0.0
    %224 = vmatpush1.msra.mxu0 0.0
    %225 = vmatprep.subr.mxu0 0.0
    %226 = vmatpush1.msra.mxu0 0.0
    %227 = vmatprep.subr.mxu0 0.0
    %228 = vmatpush1.msra.mxu0 0.0
    %229 = vmatprep.subr.mxu0 0.0
    %230 = vmatpush1.msra.mxu0 0.0
    %231 = vmatprep.subr.mxu0 0.0
    %232 = vmatpush1.msra.mxu0 0.0
    %233 = vmatprep.subr.mxu0 0.0
    %234 = vmatpush1.msra.mxu0 0.0
    %235 = vmatprep.subr.mxu0 0.0
    %236 = vmatpush1.msra.mxu0 0.0
    %237 = vmatprep.subr.mxu0 0.0
    %238 = vmatpush1.msra.mxu0 0.0
    %239 = vmatprep.subr.mxu0 0.0
    %240 = vmatpush1.msra.mxu0 0.0
    %241 = vmatprep.mubr.f32.mxu0 0.0
    %242 = vmatmul.mubr.f32.gmra.mrb[0].mxu0 %v175
    %v243 = vpop.f32.mrb[0].mxu0
    %v244 = vadd.f32 0.0, %v243
    %v245 = vpop.f32.mrb[0].mxu0
    %246 = vdwg.mxu0
    %v247 = vadd.f32 %v173, %v244
    %v248 = vtanh.pop %v247
    %v249 = vmul.f32 %v248, 0.5
    %v250 = vadd.f32 %v249, 0.5
    %v251 = vsel %vm172, %v248, %v250
    %v252 = vmul.f32 %v251, 0.0
    %254 = vrot.lane.b32.xlu0 %v251, 64
    %v255 = vpop.permute.xlu0 %254
    %v257 = vmul.f32 %v251, %v255
    %259 = vrot.lane.b32.xlu0 %v257, 32
    %v260 = vpop.permute.xlu0 %259
    %v262 = vadd.f32 %v252, %v260
    %v263 = vtanh.pop %v262
    %265 = vrot.lane.b32.xlu0 %v263, 64
    %v266 = vpop.permute.xlu0 %265
    %v268 = vmul.f32 %v251, %v266
    %270 = vrot.lane.b32.xlu0 %v268, 32
    %v271 = vpop.permute.xlu0 %270
    %vm273 = vcmask 253952
    %274 = vst.msk [vmem:[#allocation3] sm:$0x1] %vm273, %v271
    %s275 = scalar_lea.vmem [#allocation2], 1
    %v276 = vld [vmem:[%s275] sm:$0x1]
    %v277 = vsel %vm89, %v271, 0
    %279 = vmatprep.subr.mxu0 0.0
    %280 = vmatpush1.msra.mxu0 %v164
    %281 = vmatprep.subr.mxu0 0.0
    %282 = vmatpush1.msra.mxu0 %v165
    %283 = vmatprep.subr.mxu0 0.0
    %284 = vmatpush1.msra.mxu0 %v166
    %285 = vmatprep.subr.mxu0 0.0
    %286 = vmatpush1.msra.mxu0 %v167
    %287 = vmatprep.subr.mxu0 0.0
    %288 = vmatpush1.msra.mxu0 0.0
    %289 = vmatprep.subr.mxu0 0.0
    %290 = vmatpush1.msra.mxu0 0.0
    %291 = vmatprep.subr.mxu0 0.0
    %292 = vmatpush1.msra.mxu0 0.0
    %293 = vmatprep.subr.mxu0 0.0
    %294 = vmatpush1.msra.mxu0 0.0
    %295 = vmatprep.subr.mxu0 0.0
    %296 = vmatpush1.msra.mxu0 0.0
    %297 = vmatprep.subr.mxu0 0.0
    %298 = vmatpush1.msra.mxu0 0.0
    %299 = vmatprep.subr.mxu0 0.0
    %300 = vmatpush1.msra.mxu0 0.0
    %301 = vmatprep.subr.mxu0 0.0
    %302 = vmatpush1.msra.mxu0 0.0
    %303 = vmatprep.subr.mxu0 0.0
    %304 = vmatpush1.msra.mxu0 0.0
    %305 = vmatprep.subr.mxu0 0.0
    %306 = vmatpush1.msra.mxu0 0.0
    %307 = vmatprep.subr.mxu0 0.0
    %308 = vmatpush1.msra.mxu0 0.0
    %309 = vmatprep.subr.mxu0 0.0
    %310 = vmatpush1.msra.mxu0 0.0
    %311 = vmatprep.subr.mxu0 0.0
    %312 = vmatpush1.msra.mxu0 0.0
    %313 = vmatprep.subr.mxu0 0.0
    %314 = vmatpush1.msra.mxu0 0.0
    %315 = vmatprep.subr.mxu0 0.0
    %316 = vmatpush1.msra.mxu0 0.0
    %317 = vmatprep.subr.mxu0 0.0
    %318 = vmatpush1.msra.mxu0 0.0
    %319 = vmatprep.subr.mxu0 0.0
    %320 = vmatpush1.msra.mxu0 0.0
    %321 = vmatprep.subr.mxu0 0.0
    %322 = vmatpush1.msra.mxu0 0.0
    %323 = vmatprep.subr.mxu0 0.0
    %324 = vmatpush1.msra.mxu0 0.0
    %325 = vmatprep.subr.mxu0 0.0
    %326 = vmatpush1.msra.mxu0 0.0
    %327 = vmatprep.subr.mxu0 0.0
    %328 = vmatpush1.msra.mxu0 0.0
    %329 = vmatprep.subr.mxu0 0.0
    %330 = vmatpush1.msra.mxu0 0.0
    %331 = vmatprep.subr.mxu0 0.0
    %332 = vmatpush1.msra.mxu0 0.0
    %333 = vmatprep.subr.mxu0 0.0
    %334 = vmatpush1.msra.mxu0 0.0
    %335 = vmatprep.subr.mxu0 0.0
    %336 = vmatpush1.msra.mxu0 0.0
    %337 = vmatprep.subr.mxu0 0.0
    %338 = vmatpush1.msra.mxu0 0.0
    %339 = vmatprep.subr.mxu0 0.0
    %340 = vmatpush1.msra.mxu0 0.0
    %341 = vmatprep.subr.mxu0 0.0
    %342 = vmatpush1.msra.mxu0 0.0
    %343 = vmatprep.mubr.f32.mxu0 0.0
    %344 = vmatmul.mubr.f32.gmra.mrb[0].mxu0 %v277
    %v345 = vpop.f32.mrb[0].mxu0
    %v346 = vadd.f32 0.0, %v345
    %v347 = vpop.f32.mrb[0].mxu0
    %348 = vdwg.mxu0
    %v349 = vadd.f32 %v276, %v346
    %v350 = vtanh.pop %v349
    %v351 = vmul.f32 %v350, 0.5
    %v352 = vadd.f32 %v351, 0.5
    %v353 = vsel %vm172, %v350, %v352
    %v354 = vmul.f32 %v353, %v262
    %356 = vrot.lane.b32.xlu0 %v353, 64
    %v357 = vpop.permute.xlu0 %356
    %v359 = vmul.f32 %v353, %v357
    %361 = vrot.lane.b32.xlu0 %v359, 32
    %v362 = vpop.permute.xlu0 %361
    %v364 = vadd.f32 %v354, %v362
    %v365 = vtanh.pop %v364
    %367 = vrot.lane.b32.xlu0 %v365, 64
    %v368 = vpop.permute.xlu0 %367
    %v370 = vmul.f32 %v353, %v368
    %372 = vrot.lane.b32.xlu0 %v370, 32
    %v373 = vpop.permute.xlu0 %372
    %s375 = scalar_lea.vmem [#allocation3], 1
    %376 = vst.msk [vmem:[%s375] sm:$0x1] %vm273, %v373
    %s377 = scalar_lea.vmem [#allocation2], 2
    %v378 = vld [vmem:[%s377] sm:$0x1]
    %v379 = vsel %vm89, %v373, 0
    %381 = vmatprep.subr.mxu0 0.0
    %382 = vmatpush1.msra.mxu0 %v164
    %383 = vmatprep.subr.mxu0 0.0
    %384 = vmatpush1.msra.mxu0 %v165
    %385 = vmatprep.subr.mxu0 0.0
    %386 = vmatpush1.msra.mxu0 %v166
    %387 = vmatprep.subr.mxu0 0.0
    %388 = vmatpush1.msra.mxu0 %v167
    %389 = vmatprep.subr.mxu0 0.0
    %390 = vmatpush1.msra.mxu0 0.0
    %391 = vmatprep.subr.mxu0 0.0
    %392 = vmatpush1.msra.mxu0 0.0
    %393 = vmatprep.subr.mxu0 0.0
    %394 = vmatpush1.msra.mxu0 0.0
    %395 = vmatprep.subr.mxu0 0.0
    %396 = vmatpush1.msra.mxu0 0.0
    %397 = vmatprep.subr.mxu0 0.0
    %398 = vmatpush1.msra.mxu0 0.0
    %399 = vmatprep.subr.mxu0 0.0
    %400 = vmatpush1.msra.mxu0 0.0
    %401 = vmatprep.subr.mxu0 0.0
    %402 = vmatpush1.msra.mxu0 0.0
    %403 = vmatprep.subr.mxu0 0.0
    %404 = vmatpush1.msra.mxu0 0.0
    %405 = vmatprep.subr.mxu0 0.0
    %406 = vmatpush1.msra.mxu0 0.0
    %407 = vmatprep.subr.mxu0 0.0
    %408 = vmatpush1.msra.mxu0 0.0
    %409 = vmatprep.subr.mxu0 0.0
    %410 = vmatpush1.msra.mxu0 0.0
    %411 = vmatprep.subr.mxu0 0.0
    %412 = vmatpush1.msra.mxu0 0.0
    %413 = vmatprep.subr.mxu0 0.0
    %414 = vmatpush1.msra.mxu0 0.0
    %415 = vmatprep.subr.mxu0 0.0
    %416 = vmatpush1.msra.mxu0 0.0
    %417 = vmatprep.subr.mxu0 0.0
    %418 = vmatpush1.msra.mxu0 0.0
    %419 = vmatprep.subr.mxu0 0.0
    %420 = vmatpush1.msra.mxu0 0.0
    %421 = vmatprep.subr.mxu0 0.0
    %422 = vmatpush1.msra.mxu0 0.0
    %423 = vmatprep.subr.mxu0 0.0
    %424 = vmatpush1.msra.mxu0 0.0
    %425 = vmatprep.subr.mxu0 0.0
    %426 = vmatpush1.msra.mxu0 0.0
    %427 = vmatprep.subr.mxu0 0.0
    %428 = vmatpush1.msra.mxu0 0.0
    %429 = vmatprep.subr.mxu0 0.0
    %430 = vmatpush1.msra.mxu0 0.0
    %431 = vmatprep.subr.mxu0 0.0
    %432 = vmatpush1.msra.mxu0 0.0
    %433 = vmatprep.subr.mxu0 0.0
    %434 = vmatpush1.msra.mxu0 0.0
    %435 = vmatprep.subr.mxu0 0.0
    %436 = vmatpush1.msra.mxu0 0.0
    %437 = vmatprep.subr.mxu0 0.0
    %438 = vmatpush1.msra.mxu0 0.0
    %439 = vmatprep.subr.mxu0 0.0
    %440 = vmatpush1.msra.mxu0 0.0
    %441 = vmatprep.subr.mxu0 0.0
    %442 = vmatpush1.msra.mxu0 0.0
    %443 = vmatprep.subr.mxu0 0.0
    %444 = vmatpush1.msra.mxu0 0.0
    %445 = vmatprep.mubr.f32.mxu0 0.0
    %446 = vmatmul.mubr.f32.gmra.mrb[0].mxu0 %v379
    %v447 = vpop.f32.mrb[0].mxu0
    %v448 = vadd.f32 0.0, %v447
    %v449 = vpop.f32.mrb[0].mxu0
    %450 = vdwg.mxu0
    %v451 = vadd.f32 %v378, %v448
    %v452 = vtanh.pop %v451
    %v453 = vmul.f32 %v452, 0.5
    %v454 = vadd.f32 %v453, 0.5
    %v455 = vsel %vm172, %v452, %v454
    %v456 = vmul.f32 %v455, %v364
    %458 = vrot.lane.b32.xlu0 %v455, 64
    %v459 = vpop.permute.xlu0 %458
    %v461 = vmul.f32 %v455, %v459
    %463 = vrot.lane.b32.xlu0 %v461, 32
    %v464 = vpop.permute.xlu0 %463
    %v466 = vadd.f32 %v456, %v464
    %v467 = vtanh.pop %v466
    %469 = vrot.lane.b32.xlu0 %v467, 64
    %v470 = vpop.permute.xlu0 %469
    %v472 = vmul.f32 %v455, %v470
    %474 = vrot.lane.b32.xlu0 %v472, 32
    %v475 = vpop.permute.xlu0 %474
    %s477 = scalar_lea.vmem [#allocation3], 2
    %478 = vst.msk [vmem:[%s477] sm:$0x1] %vm273, %v475
    %s479 = scalar_lea.vmem [#allocation2], 3
    %v480 = vld [vmem:[%s479] sm:$0x1]
    %v481 = vsel %vm89, %v475, 0
    %483 = vmatprep.subr.mxu0 0.0
    %484 = vmatpush1.msra.mxu0 %v164
    %485 = vmatprep.subr.mxu0 0.0
    %486 = vmatpush1.msra.mxu0 %v165
    %487 = vmatprep.subr.mxu0 0.0
    %488 = vmatpush1.msra.mxu0 %v166
    %489 = vmatprep.subr.mxu0 0.0
    %490 = vmatpush1.msra.mxu0 %v167
    %491 = vmatprep.subr.mxu0 0.0
    %492 = vmatpush1.msra.mxu0 0.0
    %493 = vmatprep.subr.mxu0 0.0
    %494 = vmatpush1.msra.mxu0 0.0
    %495 = vmatprep.subr.mxu0 0.0
    %496 = vmatpush1.msra.mxu0 0.0
    %497 = vmatprep.subr.mxu0 0.0
    %498 = vmatpush1.msra.mxu0 0.0
    %499 = vmatprep.subr.mxu0 0.0
    %500 = vmatpush1.msra.mxu0 0.0
    %501 = vmatprep.subr.mxu0 0.0
    %502 = vmatpush1.msra.mxu0 0.0
    %503 = vmatprep.subr.mxu0 0.0
    %504 = vmatpush1.msra.mxu0 0.0
    %505 = vmatprep.subr.mxu0 0.0
    %506 = vmatpush1.msra.mxu0 0.0
    %507 = vmatprep.subr.mxu0 0.0
    %508 = vmatpush1.msra.mxu0 0.0
    %509 = vmatprep.subr.mxu0 0.0
    %510 = vmatpush1.msra.mxu0 0.0
    %511 = vmatprep.subr.mxu0 0.0
    %512 = vmatpush1.msra.mxu0 0.0
    %513 = vmatprep.subr.mxu0 0.0
    %514 = vmatpush1.msra.mxu0 0.0
    %515 = vmatprep.subr.mxu0 0.0
    %516 = vmatpush1.msra.mxu0 0.0
    %517 = vmatprep.subr.mxu0 0.0
    %518 = vmatpush1.msra.mxu0 0.0
    %519 = vmatprep.subr.mxu0 0.0
    %520 = vmatpush1.msra.mxu0 0.0
    %521 = vmatprep.subr.mxu0 0.0
    %522 = vmatpush1.msra.mxu0 0.0
    %523 = vmatprep.subr.mxu0 0.0
    %524 = vmatpush1.msra.mxu0 0.0
    %525 = vmatprep.subr.mxu0 0.0
    %526 = vmatpush1.msra.mxu0 0.0
    %527 = vmatprep.subr.mxu0 0.0
    %528 = vmatpush1.msra.mxu0 0.0
    %529 = vmatprep.subr.mxu0 0.0
    %530 = vmatpush1.msra.mxu0 0.0
    %531 = vmatprep.subr.mxu0 0.0
    %532 = vmatpush1.msra.mxu0 0.0
    %533 = vmatprep.subr.mxu0 0.0
    %534 = vmatpush1.msra.mxu0 0.0
    %535 = vmatprep.subr.mxu0 0.0
    %536 = vmatpush1.msra.mxu0 0.0
    %537 = vmatprep.subr.mxu0 0.0
    %538 = vmatpush1.msra.mxu0 0.0
    %539 = vmatprep.subr.mxu0 0.0
    %540 = vmatpush1.msra.mxu0 0.0
    %541 = vmatprep.subr.mxu0 0.0
    %542 = vmatpush1.msra.mxu0 0.0
    %543 = vmatprep.subr.mxu0 0.0
    %544 = vmatpush1.msra.mxu0 0.0
    %545 = vmatprep.subr.mxu0 0.0
    %546 = vmatpush1.msra.mxu0 0.0
    %547 = vmatprep.mubr.f32.mxu0 0.0
    %548 = vmatmul.mubr.f32.gmra.mrb[0].mxu0 %v481
    %v549 = vpop.f32.mrb[0].mxu0
    %v550 = vadd.f32 0.0, %v549
    %v551 = vpop.f32.mrb[0].mxu0
    %552 = vdwg.mxu0
    %v553 = vadd.f32 %v480, %v550
    %v554 = vtanh.pop %v553
    %v555 = vmul.f32 %v554, 0.5
    %v556 = vadd.f32 %v555, 0.5
    %v557 = vsel %vm172, %v554, %v556
    %v558 = vmul.f32 %v557, %v466
    %560 = vrot.lane.b32.xlu0 %v557, 64
    %v561 = vpop.permute.xlu0 %560
    %v563 = vmul.f32 %v557, %v561
    %565 = vrot.lane.b32.xlu0 %v563, 32
    %v566 = vpop.permute.xlu0 %565
    %v568 = vadd.f32 %v558, %v566
    %v569 = vtanh.pop %v568
    %571 = vrot.lane.b32.xlu0 %v569, 64
    %v572 = vpop.permute.xlu0 %571
    %v574 = vmul.f32 %v557, %v572
    %576 = vrot.lane.b32.xlu0 %v574, 32
    %v577 = vpop.permute.xlu0 %576
    %s579 = scalar_lea.vmem [#allocation3], 3
    %580 = vst.msk [vmem:[%s579] sm:$0x1] %vm273, %v577
    %s581 = scalar_lea.vmem [#allocation2], 4
    %v582 = vld [vmem:[%s581] sm:$0x1]
    %v583 = vsel %vm89, %v577, 0
    %585 = vmatprep.subr.mxu0 0.0
    %586 = vmatpush1.msra.mxu0 %v164
    %587 = vmatprep.subr.mxu0 0.0
    %588 = vmatpush1.msra.mxu0 %v165
    %589 = vmatprep.subr.mxu0 0.0
    %590 = vmatpush1.msra.mxu0 %v166
    %591 = vmatprep.subr.mxu0 0.0
    %592 = vmatpush1.msra.mxu0 %v167
    %593 = vmatprep.subr.mxu0 0.0
    %594 = vmatpush1.msra.mxu0 0.0
    %595 = vmatprep.subr.mxu0 0.0
    %596 = vmatpush1.msra.mxu0 0.0
    %597 = vmatprep.subr.mxu0 0.0
    %598 = vmatpush1.msra.mxu0 0.0
    %599 = vmatprep.subr.mxu0 0.0
    %600 = vmatpush1.msra.mxu0 0.0
    %601 = vmatprep.subr.mxu0 0.0
    %602 = vmatpush1.msra.mxu0 0.0
    %603 = vmatprep.subr.mxu0 0.0
    %604 = vmatpush1.msra.mxu0 0.0
    %605 = vmatprep.subr.mxu0 0.0
    %606 = vmatpush1.msra.mxu0 0.0
    %607 = vmatprep.subr.mxu0 0.0
    %608 = vmatpush1.msra.mxu0 0.0
    %609 = vmatprep.subr.mxu0 0.0
    %610 = vmatpush1.msra.mxu0 0.0
    %611 = vmatprep.subr.mxu0 0.0
    %612 = vmatpush1.msra.mxu0 0.0
    %613 = vmatprep.subr.mxu0 0.0
    %614 = vmatpush1.msra.mxu0 0.0
    %615 = vmatprep.subr.mxu0 0.0
    %616 = vmatpush1.msra.mxu0 0.0
    %617 = vmatprep.subr.mxu0 0.0
    %618 = vmatpush1.msra.mxu0 0.0
    %619 = vmatprep.subr.mxu0 0.0
    %620 = vmatpush1.msra.mxu0 0.0
    %621 = vmatprep.subr.mxu0 0.0
    %622 = vmatpush1.msra.mxu0 0.0
    %623 = vmatprep.subr.mxu0 0.0
    %624 = vmatpush1.msra.mxu0 0.0
    %625 = vmatprep.subr.mxu0 0.0
    %626 = vmatpush1.msra.mxu0 0.0
    %627 = vmatprep.subr.mxu0 0.0
    %628 = vmatpush1.msra.mxu0 0.0
    %629 = vmatprep.subr.mxu0 0.0
    %630 = vmatpush1.msra.mxu0 0.0
    %631 = vmatprep.subr.mxu0 0.0
    %632 = vmatpush1.msra.mxu0 0.0
    %633 = vmatprep.subr.mxu0 0.0
    %634 = vmatpush1.msra.mxu0 0.0
    %635 = vmatprep.subr.mxu0 0.0
    %636 = vmatpush1.msra.mxu0 0.0
    %637 = vmatprep.subr.mxu0 0.0
    %638 = vmatpush1.msra.mxu0 0.0
    %639 = vmatprep.subr.mxu0 0.0
    %640 = vmatpush1.msra.mxu0 0.0
    %641 = vmatprep.subr.mxu0 0.0
    %642 = vmatpush1.msra.mxu0 0.0
    %643 = vmatprep.subr.mxu0 0.0
    %644 = vmatpush1.msra.mxu0 0.0
    %645 = vmatprep.subr.mxu0 0.0
    %646 = vmatpush1.msra.mxu0 0.0
    %647 = vmatprep.subr.mxu0 0.0
    %648 = vmatpush1.msra.mxu0 0.0
    %649 = vmatprep.mubr.f32.mxu0 0.0
    %650 = vmatmul.mubr.f32.gmra.mrb[0].mxu0 %v583
    %v651 = vpop.f32.mrb[0].mxu0
    %v652 = vadd.f32 0.0, %v651
    %v653 = vpop.f32.mrb[0].mxu0
    %654 = vdwg.mxu0
    %v655 = vadd.f32 %v582, %v652
    %v656 = vtanh.pop %v655
    %v657 = vmul.f32 %v656, 0.5
    %v658 = vadd.f32 %v657, 0.5
    %v659 = vsel %vm172, %v656, %v658
    %v660 = vmul.f32 %v659, %v568
    %662 = vrot.lane.b32.xlu0 %v659, 64
    %v663 = vpop.permute.xlu0 %662
    %v665 = vmul.f32 %v659, %v663
    %667 = vrot.lane.b32.xlu0 %v665, 32
    %v668 = vpop.permute.xlu0 %667
    %v670 = vadd.f32 %v660, %v668
    %v671 = vtanh.pop %v670
    %673 = vrot.lane.b32.xlu0 %v671, 64
    %v674 = vpop.permute.xlu0 %673
    %v676 = vmul.f32 %v659, %v674
    %678 = vrot.lane.b32.xlu0 %v676, 32
    %v679 = vpop.permute.xlu0 %678
    %s681 = scalar_lea.vmem [#allocation3], 4
    %682 = vst.msk [vmem:[%s681] sm:$0x1] %vm273, %v679
    %s683 = scalar_lea.vmem [#allocation2], 5
    %v684 = vld [vmem:[%s683] sm:$0x1]
    %v685 = vsel %vm89, %v679, 0
    %687 = vmatprep.subr.mxu0 0.0
    %688 = vmatpush1.msra.mxu0 %v164
    %689 = vmatprep.subr.mxu0 0.0
    %690 = vmatpush1.msra.mxu0 %v165
    %691 = vmatprep.subr.mxu0 0.0
    %692 = vmatpush1.msra.mxu0 %v166
    %693 = vmatprep.subr.mxu0 0.0
    %694 = vmatpush1.msra.mxu0 %v167
    %695 = vmatprep.subr.mxu0 0.0
    %696 = vmatpush1.msra.mxu0 0.0
    %697 = vmatprep.subr.mxu0 0.0
    %698 = vmatpush1.msra.mxu0 0.0
    %699 = vmatprep.subr.mxu0 0.0
    %700 = vmatpush1.msra.mxu0 0.0
    %701 = vmatprep.subr.mxu0 0.0
    %702 = vmatpush1.msra.mxu0 0.0
    %703 = vmatprep.subr.mxu0 0.0
    %704 = vmatpush1.msra.mxu0 0.0
    %705 = vmatprep.subr.mxu0 0.0
    %706 = vmatpush1.msra.mxu0 0.0
    %707 = vmatprep.subr.mxu0 0.0
    %708 = vmatpush1.msra.mxu0 0.0
    %709 = vmatprep.subr.mxu0 0.0
    %710 = vmatpush1.msra.mxu0 0.0
    %711 = vmatprep.subr.mxu0 0.0
    %712 = vmatpush1.msra.mxu0 0.0
    %713 = vmatprep.subr.mxu0 0.0
    %714 = vmatpush1.msra.mxu0 0.0
    %715 = vmatprep.subr.mxu0 0.0
    %716 = vmatpush1.msra.mxu0 0.0
    %717 = vmatprep.subr.mxu0 0.0
    %718 = vmatpush1.msra.mxu0 0.0
    %719 = vmatprep.subr.mxu0 0.0
    %720 = vmatpush1.msra.mxu0 0.0
    %721 = vmatprep.subr.mxu0 0.0
    %722 = vmatpush1.msra.mxu0 0.0
    %723 = vmatprep.subr.mxu0 0.0
    %724 = vmatpush1.msra.mxu0 0.0
    %725 = vmatprep.subr.mxu0 0.0
    %726 = vmatpush1.msra.mxu0 0.0
    %727 = vmatprep.subr.mxu0 0.0
    %728 = vmatpush1.msra.mxu0 0.0
    %729 = vmatprep.subr.mxu0 0.0
    %730 = vmatpush1.msra.mxu0 0.0
    %731 = vmatprep.subr.mxu0 0.0
    %732 = vmatpush1.msra.mxu0 0.0
    %733 = vmatprep.subr.mxu0 0.0
    %734 = vmatpush1.msra.mxu0 0.0
    %735 = vmatprep.subr.mxu0 0.0
    %736 = vmatpush1.msra.mxu0 0.0
    %737 = vmatprep.subr.mxu0 0.0
    %738 = vmatpush1.msra.mxu0 0.0
    %739 = vmatprep.subr.mxu0 0.0
    %740 = vmatpush1.msra.mxu0 0.0
    %741 = vmatprep.subr.mxu0 0.0
    %742 = vmatpush1.msra.mxu0 0.0
    %743 = vmatprep.subr.mxu0 0.0
    %744 = vmatpush1.msra.mxu0 0.0
    %745 = vmatprep.subr.mxu0 0.0
    %746 = vmatpush1.msra.mxu0 0.0
    %747 = vmatprep.subr.mxu0 0.0
    %748 = vmatpush1.msra.mxu0 0.0
    %749 = vmatprep.subr.mxu0 0.0
    %750 = vmatpush1.msra.mxu0 0.0
    %751 = vmatprep.mubr.f32.mxu0 0.0
    %752 = vmatmul.mubr.f32.gmra.mrb[0].mxu0 %v685
    %v753 = vpop.f32.mrb[0].mxu0
    %v754 = vadd.f32 0.0, %v753
    %v755 = vpop.f32.mrb[0].mxu0
    %756 = vdwg.mxu0
    %v757 = vadd.f32 %v684, %v754
    %v758 = vtanh.pop %v757
    %v759 = vmul.f32 %v758, 0.5
    %v760 = vadd.f32 %v759, 0.5
    %v761 = vsel %vm172, %v758, %v760
    %v762 = vmul.f32 %v761, %v670
    %764 = vrot.lane.b32.xlu0 %v761, 64
    %v765 = vpop.permute.xlu0 %764
    %v767 = vmul.f32 %v761, %v765
    %769 = vrot.lane.b32.xlu0 %v767, 32
    %v770 = vpop.permute.xlu0 %769
    %v772 = vadd.f32 %v762, %v770
    %v773 = vtanh.pop %v772
    %775 = vrot.lane.b32.xlu0 %v773, 64
    %v776 = vpop.permute.xlu0 %775
    %v778 = vmul.f32 %v761, %v776
    %780 = vrot.lane.b32.xlu0 %v778, 32
    %v781 = vpop.permute.xlu0 %780
    %s783 = scalar_lea.vmem [#allocation3], 5
    %784 = vst.msk [vmem:[%s783] sm:$0x1] %vm273, %v781
    %s785 = scalar_lea.vmem [#allocation2], 6
    %v786 = vld [vmem:[%s785] sm:$0x1]
    %v787 = vsel %vm89, %v781, 0
    %789 = vmatprep.subr.mxu0 0.0
    %790 = vmatpush1.msra.mxu0 %v164
    %791 = vmatprep.subr.mxu0 0.0
    %792 = vmatpush1.msra.mxu0 %v165
    %793 = vmatprep.subr.mxu0 0.0
    %794 = vmatpush1.msra.mxu0 %v166
    %795 = vmatprep.subr.mxu0 0.0
    %796 = vmatpush1.msra.mxu0 %v167
    %797 = vmatprep.subr.mxu0 0.0
    %798 = vmatpush1.msra.mxu0 0.0
    %799 = vmatprep.subr.mxu0 0.0
    %800 = vmatpush1.msra.mxu0 0.0
    %801 = vmatprep.subr.mxu0 0.0
    %802 = vmatpush1.msra.mxu0 0.0
    %803 = vmatprep.subr.mxu0 0.0
    %804 = vmatpush1.msra.mxu0 0.0
    %805 = vmatprep.subr.mxu0 0.0
    %806 = vmatpush1.msra.mxu0 0.0
    %807 = vmatprep.subr.mxu0 0.0
    %808 = vmatpush1.msra.mxu0 0.0
    %809 = vmatprep.subr.mxu0 0.0
    %810 = vmatpush1.msra.mxu0 0.0
    %811 = vmatprep.subr.mxu0 0.0
    %812 = vmatpush1.msra.mxu0 0.0
    %813 = vmatprep.subr.mxu0 0.0
    %814 = vmatpush1.msra.mxu0 0.0
    %815 = vmatprep.subr.mxu0 0.0
    %816 = vmatpush1.msra.mxu0 0.0
    %817 = vmatprep.subr.mxu0 0.0
    %818 = vmatpush1.msra.mxu0 0.0
    %819 = vmatprep.subr.mxu0 0.0
    %820 = vmatpush1.msra.mxu0 0.0
    %821 = vmatprep.subr.mxu0 0.0
    %822 = vmatpush1.msra.mxu0 0.0
    %823 = vmatprep.subr.mxu0 0.0
    %824 = vmatpush1.msra.mxu0 0.0
    %825 = vmatprep.subr.mxu0 0.0
    %826 = vmatpush1.msra.mxu0 0.0
    %827 = vmatprep.subr.mxu0 0.0
    %828 = vmatpush1.msra.mxu0 0.0
    %829 = vmatprep.subr.mxu0 0.0
    %830 = vmatpush1.msra.mxu0 0.0
    %831 = vmatprep.subr.mxu0 0.0
    %832 = vmatpush1.msra.mxu0 0.0
    %833 = vmatprep.subr.mxu0 0.0
    %834 = vmatpush1.msra.mxu0 0.0
    %835 = vmatprep.subr.mxu0 0.0
    %836 = vmatpush1.msra.mxu0 0.0
    %837 = vmatprep.subr.mxu0 0.0
    %838 = vmatpush1.msra.mxu0 0.0
    %839 = vmatprep.subr.mxu0 0.0
    %840 = vmatpush1.msra.mxu0 0.0
    %841 = vmatprep.subr.mxu0 0.0
    %842 = vmatpush1.msra.mxu0 0.0
    %843 = vmatprep.subr.mxu0 0.0
    %844 = vmatpush1.msra.mxu0 0.0
    %845 = vmatprep.subr.mxu0 0.0
    %846 = vmatpush1.msra.mxu0 0.0
    %847 = vmatprep.subr.mxu0 0.0
    %848 = vmatpush1.msra.mxu0 0.0
    %849 = vmatprep.subr.mxu0 0.0
    %850 = vmatpush1.msra.mxu0 0.0
    %851 = vmatprep.subr.mxu0 0.0
    %852 = vmatpush1.msra.mxu0 0.0
    %853 = vmatprep.mubr.f32.mxu0 0.0
    %854 = vmatmul.mubr.f32.gmra.mrb[0].mxu0 %v787
    %v855 = vpop.f32.mrb[0].mxu0
    %v856 = vadd.f32 0.0, %v855
    %v857 = vpop.f32.mrb[0].mxu0
    %858 = vdwg.mxu0
    %v859 = vadd.f32 %v786, %v856
    %v860 = vtanh.pop %v859
    %v861 = vmul.f32 %v860, 0.5
    %v862 = vadd.f32 %v861, 0.5
    %v863 = vsel %vm172, %v860, %v862
    %v864 = vmul.f32 %v863, %v772
    %866 = vrot.lane.b32.xlu0 %v863, 64
    %v867 = vpop.permute.xlu0 %866
    %v869 = vmul.f32 %v863, %v867
    %871 = vrot.lane.b32.xlu0 %v869, 32
    %v872 = vpop.permute.xlu0 %871
    %v874 = vadd.f32 %v864, %v872
    %v875 = vtanh.pop %v874
    %877 = vrot.lane.b32.xlu0 %v875, 64
    %v878 = vpop.permute.xlu0 %877
    %v880 = vmul.f32 %v863, %v878
    %882 = vrot.lane.b32.xlu0 %v880, 32
    %v883 = vpop.permute.xlu0 %882
    %s885 = scalar_lea.vmem [#allocation3], 6
    %886 = vst.msk [vmem:[%s885] sm:$0x1] %vm273, %v883
    %s887 = scalar_lea.vmem [#allocation2], 7
    %v888 = vld [vmem:[%s887] sm:$0x1]
    %v889 = vsel %vm89, %v883, 0
    %891 = vmatprep.subr.mxu0 0.0
    %892 = vmatpush1.msra.mxu0 %v164
    %893 = vmatprep.subr.mxu0 0.0
    %894 = vmatpush1.msra.mxu0 %v165
    %895 = vmatprep.subr.mxu0 0.0
    %896 = vmatpush1.msra.mxu0 %v166
    %897 = vmatprep.subr.mxu0 0.0
    %898 = vmatpush1.msra.mxu0 %v167
    %899 = vmatprep.subr.mxu0 0.0
    %900 = vmatpush1.msra.mxu0 0.0
    %901 = vmatprep.subr.mxu0 0.0
    %902 = vmatpush1.msra.mxu0 0.0
    %903 = vmatprep.subr.mxu0 0.0
    %904 = vmatpush1.msra.mxu0 0.0
    %905 = vmatprep.subr.mxu0 0.0
    %906 = vmatpush1.msra.mxu0 0.0
    %907 = vmatprep.subr.mxu0 0.0
    %908 = vmatpush1.msra.mxu0 0.0
    %909 = vmatprep.subr.mxu0 0.0
    %910 = vmatpush1.msra.mxu0 0.0
    %911 = vmatprep.subr.mxu0 0.0
    %912 = vmatpush1.msra.mxu0 0.0
    %913 = vmatprep.subr.mxu0 0.0
    %914 = vmatpush1.msra.mxu0 0.0
    %915 = vmatprep.subr.mxu0 0.0
    %916 = vmatpush1.msra.mxu0 0.0
    %917 = vmatprep.subr.mxu0 0.0
    %918 = vmatpush1.msra.mxu0 0.0
    %919 = vmatprep.subr.mxu0 0.0
    %920 = vmatpush1.msra.mxu0 0.0
    %921 = vmatprep.subr.mxu0 0.0
    %922 = vmatpush1.msra.mxu0 0.0
    %923 = vmatprep.subr.mxu0 0.0
    %924 = vmatpush1.msra.mxu0 0.0
    %925 = vmatprep.subr.mxu0 0.0
    %926 = vmatpush1.msra.mxu0 0.0
    %927 = vmatprep.subr.mxu0 0.0
    %928 = vmatpush1.msra.mxu0 0.0
    %929 = vmatprep.subr.mxu0 0.0
    %930 = vmatpush1.msra.mxu0 0.0
    %931 = vmatprep.subr.mxu0 0.0
    %932 = vmatpush1.msra.mxu0 0.0
    %933 = vmatprep.subr.mxu0 0.0
    %934 = vmatpush1.msra.mxu0 0.0
    %935 = vmatprep.subr.mxu0 0.0
    %936 = vmatpush1.msra.mxu0 0.0
    %937 = vmatprep.subr.mxu0 0.0
    %938 = vmatpush1.msra.mxu0 0.0
    %939 = vmatprep.subr.mxu0 0.0
    %940 = vmatpush1.msra.mxu0 0.0
    %941 = vmatprep.subr.mxu0 0.0
    %942 = vmatpush1.msra.mxu0 0.0
    %943 = vmatprep.subr.mxu0 0.0
    %944 = vmatpush1.msra.mxu0 0.0
    %945 = vmatprep.subr.mxu0 0.0
    %946 = vmatpush1.msra.mxu0 0.0
    %947 = vmatprep.subr.mxu0 0.0
    %948 = vmatpush1.msra.mxu0 0.0
    %949 = vmatprep.subr.mxu0 0.0
    %950 = vmatpush1.msra.mxu0 0.0
    %951 = vmatprep.subr.mxu0 0.0
    %952 = vmatpush1.msra.mxu0 0.0
    %953 = vmatprep.subr.mxu0 0.0
    %954 = vmatpush1.msra.mxu0 0.0
    %955 = vmatprep.mubr.f32.mxu0 0.0
    %956 = vmatmul.mubr.f32.gmra.mrb[0].mxu0 %v889
    %v957 = vpop.f32.mrb[0].mxu0
    %v958 = vadd.f32 0.0, %v957
    %v959 = vpop.f32.mrb[0].mxu0
    %960 = vdwg.mxu0
    %v961 = vadd.f32 %v888, %v958
    %v962 = vtanh.pop %v961
    %v963 = vmul.f32 %v962, 0.5
    %v964 = vadd.f32 %v963, 0.5
    %v965 = vsel %vm172, %v962, %v964
    %v966 = vmul.f32 %v965, %v874
    %968 = vrot.lane.b32.xlu0 %v965, 64
    %v969 = vpop.permute.xlu0 %968
    %v971 = vmul.f32 %v965, %v969
    %973 = vrot.lane.b32.xlu0 %v971, 32
    %v974 = vpop.permute.xlu0 %973
    %v976 = vadd.f32 %v966, %v974
    %v977 = vtanh.pop %v976
    %979 = vrot.lane.b32.xlu0 %v977, 64
    %v980 = vpop.permute.xlu0 %979
    %v982 = vmul.f32 %v965, %v980
    %984 = vrot.lane.b32.xlu0 %v982, 32
    %v985 = vpop.permute.xlu0 %984
    %s987 = scalar_lea.vmem [#allocation3], 7
    %988 = vst.msk [vmem:[%s987] sm:$0x1] %vm273, %v985
    %v989 = vld [vmem:[#allocation3] sm:$0xff]
    %v990 = vld [vmem:[#allocation10] sm:$0xff]
    %v991 = vld [vmem:[#allocation10 + $0x8] sm:$0xff]
    %v992 = vld [vmem:[#allocation10 + $0x10] sm:$0xff]
    %v993 = vld [vmem:[#allocation10 + $0x18] sm:$0xff]
    %v994 = vld [vmem:[%s5] sm:$0x1]
    %v996 = vlaneseq
    %v997 = vshrl.u32 %v996, 7
    %v998 = vsub.s32 0, %v997
    %v999 = vrot.slane %v994, %v998
    %v1002 = vsel %vm89, %v989, 0
    %1004 = vmatprep.subr.mxu0 0.0
    %1005 = vmatpush1.msra.mxu0 %v990
    %1006 = vmatprep.subr.mxu0 0.0
    %1007 = vmatpush1.msra.mxu0 %v991
    %1008 = vmatprep.subr.mxu0 0.0
    %1009 = vmatpush1.msra.mxu0 %v992
    %1010 = vmatprep.subr.mxu0 0.0
    %1011 = vmatpush1.msra.mxu0 %v993
    %1012 = vmatprep.subr.mxu0 0.0
    %1013 = vmatpush1.msra.mxu0 0.0
    %1014 = vmatprep.subr.mxu0 0.0
    %1015 = vmatpush1.msra.mxu0 0.0
    %1016 = vmatprep.subr.mxu0 0.0
    %1017 = vmatpush1.msra.mxu0 0.0
    %1018 = vmatprep.subr.mxu0 0.0
    %1019 = vmatpush1.msra.mxu0 0.0
    %1020 = vmatprep.subr.mxu0 0.0
    %1021 = vmatpush1.msra.mxu0 0.0
    %1022 = vmatprep.subr.mxu0 0.0
    %1023 = vmatpush1.msra.mxu0 0.0
    %1024 = vmatprep.subr.mxu0 0.0
    %1025 = vmatpush1.msra.mxu0 0.0
    %1026 = vmatprep.subr.mxu0 0.0
    %1027 = vmatpush1.msra.mxu0 0.0
    %1028 = vmatprep.subr.mxu0 0.0
    %1029 = vmatpush1.msra.mxu0 0.0
    %1030 = vmatprep.subr.mxu0 0.0
    %1031 = vmatpush1.msra.mxu0 0.0
    %1032 = vmatprep.subr.mxu0 0.0
    %1033 = vmatpush1.msra.mxu0 0.0
    %1034 = vmatprep.subr.mxu0 0.0
    %1035 = vmatpush1.msra.mxu0 0.0
    %1036 = vmatprep.subr.mxu0 0.0
    %1037 = vmatpush1.msra.mxu0 0.0
    %1038 = vmatprep.subr.mxu0 0.0
    %1039 = vmatpush1.msra.mxu0 0.0
    %1040 = vmatprep.subr.mxu0 0.0
    %1041 = vmatpush1.msra.mxu0 0.0
    %1042 = vmatprep.subr.mxu0 0.0
    %1043 = vmatpush1.msra.mxu0 0.0
    %1044 = vmatprep.subr.mxu0 0.0
    %1045 = vmatpush1.msra.mxu0 0.0
    %1046 = vmatprep.subr.mxu0 0.0
    %1047 = vmatpush1.msra.mxu0 0.0
    %1048 = vmatprep.subr.mxu0 0.0
    %1049 = vmatpush1.msra.mxu0 0.0
    %1050 = vmatprep.subr.mxu0 0.0
    %1051 = vmatpush1.msra.mxu0 0.0
    %1052 = vmatprep.subr.mxu0 0.0
    %1053 = vmatpush1.msra.mxu0 0.0
    %1054 = vmatprep.subr.mxu0 0.0
    %1055 = vmatpush1.msra.mxu0 0.0
    %1056 = vmatprep.subr.mxu0 0.0
    %1057 = vmatpush1.msra.mxu0 0.0
    %1058 = vmatprep.subr.mxu0 0.0
    %1059 = vmatpush1.msra.mxu0 0.0
    %1060 = vmatprep.subr.mxu0 0.0
    %1061 = vmatpush1.msra.mxu0 0.0
    %1062 = vmatprep.subr.mxu0 0.0
    %1063 = vmatpush1.msra.mxu0 0.0
    %1064 = vmatprep.subr.mxu0 0.0
    %1065 = vmatpush1.msra.mxu0 0.0
    %1066 = vmatprep.subr.mxu0 0.0
    %1067 = vmatpush1.msra.mxu0 0.0
    %1068 = vmatprep.mubr.f32.mxu0 0.0
    %1069 = vmatmul.mubr.f32.gmra.mrb[0].mxu0 %v1002
    %v1070 = vpop.f32.mrb[0].mxu0
    %v1071 = vadd.f32 %v999, %v1070
    %v1072 = vpop.f32.mrb[0].mxu0
    %1073 = vdwg.mxu0
    %1074 = vmax.xlane.f32.xlu0 %v1071
    %v1075 = vpop.xlane.xlu0 %1074
    %v1076 = vsub.f32 %v1071, %v1075
    %v1077 = vmul.f32 %v1076, 1.442695
    %v1078 = vpow.pop %v1077
    %1079 = vadd.xlane.f32.xlu0 %v1078
    %v1080 = vpop.xlane.xlu0 %1079
    %v1081 = vlog2.pop %v1080
    %v1082 = vmul.f32 %v1081, 0.6931472
    %v1083 = vadd.f32 %v1075, %v1082
    %v1084 = vsub.f32 %v1071, %v1083
    %1085 = vst [vmem:[#allocation12] sm:$0xff] %v1084
    // Predicated region
    $region42: #{tpu_custom_call.1} parent=1 // pred_check
      _
    $region43: #{tpu_custom_call.1} parent=1 // pred_check_branch
      %1087 = sbr.rel (0) target = $region45
    $region44: #{tpu_custom_call.1} parent=1 // pred_region
      %s1089 = ssub.s32 128, 128
      %1090 = vsyncadd [#allocation6], %s1089
      %s1092 = sshll.u32 [#allocation12], 4
      %s1093 = int_to_ptr.vmem [resolvable:$true] %s1092
      %1095 = dma.vmem_to_hbm [thread:$0]  %s1093, 128, %s6, [#allocation6]
    $region45: #{tpu_custom_call.1} parent=1 // pred_fallthru
      _
    // Predicated region
    $region46: #{tpu_custom_call.1} parent=1 // pred_check
      _
    $region47: #{tpu_custom_call.1} parent=1 // pred_check_branch
      %1097 = sbr.rel (0) target = $region49
    $region48: #{tpu_custom_call.1} parent=1 // pred_region
      %1098 = dma.done [#allocation6], 128
    $region49: #{tpu_custom_call.1} parent=1 // pred_fallthru
      _
    %1099 = vsyncpa [#allocation5], 1
    %1100 = vsyncpa [#allocation8], 1
    %1101 = vsyncpa [#allocation11], 1
    %1102 = vsyncpa [#allocation6], 1

</llo_original>
